<compile_context>
chip_gen: v5e
topology: v5e:2x2
jax: 0.10.0
libtpu: 0.0.40
codegen_flags: <defaults>
</compile_context>

<pallas_src>
import functools

import jax
import jax.numpy as jnp
from jax import lax
from jax.experimental import pallas as pl
from jax.experimental.pallas import tpu as pltpu

EXPANSION = 4  # Bottleneck.expansion


def _vmem_limit_bytes(frac=0.75, fallback=48 * 1024 * 1024):
    """3/4 of the chip's physical VMEM, with a safe fallback."""
    try:
        cap = int(getattr(pltpu.get_tpu_info(), "vmem_capacity_bytes", 0))
    except Exception:
        cap = 0
    if cap <= 0:
        return fallback
    return int(cap * frac)


def _bottleneck_kernel(H, W, C_IN, PLANES, C_OUT,
                       x_ref, w1_ref, w2_ref, w3_ref, b12_ref, b3_ref,
                       o_ref):
    HW = H * W
    # x_ref block is already (HW, C_IN): lane-dense, no relayout on load.
    x = x_ref[...]                       # f32, kept for the identity residual
    x_bf = x.astype(jnp.bfloat16)

    # ---- conv1 (1x1, no bias) + bn1 (scale folded into w1) + relu ----
    h1 = jnp.dot(x_bf, w1_ref[...], preferred_element_type=jnp.float32)
    h1 = jnp.maximum(h1 + b12_ref[0:1, :], 0.0)

    # ---- conv2 (3x3, stride=1, padding=1, no bias) + bn2 + relu ----
    # im2col fully in bf16: cast once after the ReLU, build the padded image,
    # the 9 shifted windows and the (HW, 9P) patch in bf16, then one MXU matmul
    # with K = 9*PLANES.  (Half the im2col VMEM bytes vs building it in f32.)
    h1_bf = h1.astype(jnp.bfloat16)
    h1_img = h1_bf.reshape(H, W, PLANES)                      # split leading dim: free
    zrow = jnp.zeros((1, W, PLANES), jnp.bfloat16)
    zcol = jnp.zeros((H + 2, 1, PLANES), jnp.bfloat16)
    padded = jnp.concatenate([zrow, h1_img, zrow], axis=0)    # (H+2, W,   P)
    padded = jnp.concatenate([zcol, padded, zcol], axis=1)    # (H+2, W+2, P)
    taps = [padded[ky:ky + H, kx:kx + W, :].reshape(HW, PLANES)
            for ky in range(3) for kx in range(3)]
    patch = jnp.concatenate(taps, axis=-1)                    # (HW, 9P) bf16
    h2 = jnp.dot(patch, w2_ref[...], preferred_element_type=jnp.float32)
    h2 = jnp.maximum(h2 + b12_ref[1:2, :], 0.0)

    # ---- conv3 (1x1, no bias) + bn3 + identity residual + relu ----
    h3 = jnp.dot(h2.astype(jnp.bfloat16), w3_ref[...],
                 preferred_element_type=jnp.float32)
    # Lane-dense store: o_ref block is (HW, C_OUT), no reshape needed.
    o_ref[...] = jnp.maximum(h3 + b3_ref[...] + x, 0.0).astype(o_ref.dtype)


def bottleneck_forward(x_nchw, params):
    """Pallas forward.  x_nchw: (N, C_in, H, W) float32, NCHW like PyTorch."""
    (w1, w2, w3, s1, b1, s2, b2, s3, b3) = params
    N, C_IN, H, W = x_nchw.shape
    PLANES = w1.shape[1]
    C_OUT = w3.shape[1]
    HW = H * W
    # stride=1, downsample=None -> identity residual requires C_in == C_out
    assert C_IN == C_OUT, "identity residual requires inplanes == planes*4"

    # Parameter prep (outside the hot path):
    #   * fold BN scale into the conv weights (per output channel),
    #   * cast matmul weights to bf16,
    #   * flatten w2 to (9*P, P) for the single im2col matmul,
    #   * stack the two PLANES-sized biases into one (2, P) array.
    w1_f = (w1 * s1).astype(jnp.bfloat16)                                  # (C_IN, P)
    w2_f = (w2 * s2[jnp.newaxis, :, :]).reshape(9 * PLANES, PLANES)
    w2_f = w2_f.astype(jnp.bfloat16)                                       # (9P, P)
    w3_f = (w3 * s3).astype(jnp.bfloat16)                                  # (P, C_OUT)
    b12 = jnp.concatenate([b1, b2], axis=0)                                # (2, P) f32
    b3 = b3                                                                # (1, C_OUT) f32

    # NCHW -> (N, H*W, C): channels stay on the lane axis end-to-end, so the
    # kernel needs no lane-splitting reshape on load/store.
    x_in = jnp.transpose(x_nchw, (0, 2, 3, 1)).reshape(N, HW, C_IN)

    kernel = functools.partial(_bottleneck_kernel, H, W, C_IN, PLANES, C_OUT)

    out = pl.pallas_call(
        kernel,
        out_shape=jax.ShapeDtypeStruct((N, HW, C_OUT), x_nchw.dtype),
        grid_spec=pltpu.PrefetchScalarGridSpec(
            num_scalar_prefetch=0,
            grid=(N,),  # one image per grid step; batch axis is parallel
            in_specs=[
                # Leading batch dim squeezed out -> kernel sees (HW, C).
                pl.BlockSpec((None, HW, C_IN), lambda n: (n, 0, 0)),
                pl.BlockSpec((C_IN, PLANES), lambda n: (0, 0)),
                pl.BlockSpec((9 * PLANES, PLANES), lambda n: (0, 0)),
                pl.BlockSpec((PLANES, C_OUT), lambda n: (0, 0)),
                pl.BlockSpec((2, PLANES), lambda n: (0, 0)),
                pl.BlockSpec((1, C_OUT), lambda n: (0, 0)),
            ],
            out_specs=pl.BlockSpec((None, HW, C_OUT), lambda n: (n, 0, 0)),
        ),
        compiler_params=pltpu.CompilerParams(
            dimension_semantics=("parallel",),
            vmem_limit_bytes=_vmem_limit_bytes()),
    )(x_in, w1_f, w2_f, w3_f, b12, b3)

    return jnp.transpose(out.reshape(N, H, W, C_OUT), (0, 3, 1, 2))  # NCHW


def _fold_bn(gamma, beta, mean, var, eps=1e-5):
    scale = gamma / jnp.sqrt(var + eps)
    bias = beta - mean * scale
    return scale[None, :], bias[None, :]  # (1, C)


def make_params(key, inplanes, planes):
    """Deterministic synthetic parameters matching Bottleneck.__init__ shapes."""
    ks = jax.random.split(key, 15)
    c_out = planes * EXPANSION
    w1 = 0.1 * jax.random.normal(ks[0], (inplanes, planes), jnp.float32)
    w2 = 0.1 * jax.random.normal(ks[1], (9, planes, planes), jnp.float32)
    w3 = 0.1 * jax.random.normal(ks[2], (planes, c_out), jnp.float32)

    def bn(kg, kb, km, kv, c):
        gamma = jax.random.uniform(kg, (c,), jnp.float32, 0.5, 1.5)
        beta = 0.1 * jax.random.normal(kb, (c,), jnp.float32)
        mean = 0.1 * jax.random.normal(km, (c,), jnp.float32)
        var = jax.random.uniform(kv, (c,), jnp.float32, 0.5, 1.5)
        return _fold_bn(gamma, beta, mean, var)

    s1, b1 = bn(ks[3], ks[4], ks[5], ks[6], planes)
    s2, b2 = bn(ks[7], ks[8], ks[9], ks[10], planes)
    s3, b3 = bn(ks[11], ks[12], ks[13], ks[14], c_out)
    return (w1, w2, w3, s1, b1, s2, b2, s3, b3)


def reference_forward(x_nchw, params):
    """Pure-JAX f32 reference (same eval-mode BN semantics) for verification."""
    (w1, w2, w3, s1, b1, s2, b2, s3, b3) = params
    x = jnp.transpose(x_nchw, (0, 2, 3, 1))
    p = w1.shape[1]
    h = jnp.einsum('nhwc,cp->nhwp', x, w1)
    h = jnp.maximum(h * s1 + b1, 0.0)
    w2_hwio = w2.reshape(3, 3, p, p)
    h = lax.conv_general_dilated(h, w2_hwio, (1, 1), 'SAME',
                                 dimension_numbers=('NHWC', 'HWIO', 'NHWC'))
    h = jnp.maximum(h * s2 + b2, 0.0)
    h = jnp.einsum('nhwc,co->nhwo', h, w3)
    h = h * s3 + b3
    out = jnp.maximum(h + x, 0.0)
    return jnp.transpose(out, (0, 3, 1, 2))


if __name__ == "__main__":
    key = jax.random.PRNGKey(0)
    k_x, k_p = jax.random.split(key)

    # inplanes must equal planes * expansion since downsample=None, stride=1
    N, planes, H, W = 2, 4, 16, 16
    inplanes = planes * EXPANSION  # 16

    x = jax.random.normal(k_x, (N, inplanes, H, W), jnp.float32)  # NCHW
    params = make_params(k_p, inplanes, planes)

    out = bottleneck_forward(x, params)
    out = jax.block_until_ready(out)

    ref = reference_forward(x, params)
    assert out.shape == (N, inplanes, H, W)
    # Tolerance loosened vs a pure-f32 version: matmul operands are bf16
    # (MXU native); accumulation, BN bias, residual and ReLU remain f32.
    max_err = float(jnp.max(jnp.abs(out - ref)))
    assert jnp.allclose(out, ref, rtol=5e-2, atol=5e-2), max_err

    print("KERNEL_OK")
</pallas_src>

<mosaic_0001>
module attributes {stable_mosaic.version = 11 : i64} {
  func.func @_bottleneck_kernel(%arg0: i32, %arg1: memref<1x256x16xf32, #tpu.memory_space<vmem>>, %arg2: memref<16x4xbf16, #tpu.memory_space<vmem>>, %arg3: memref<36x4xbf16, #tpu.memory_space<vmem>>, %arg4: memref<4x16xbf16, #tpu.memory_space<vmem>>, %arg5: memref<2x4xf32, #tpu.memory_space<vmem>>, %arg6: memref<1x16xf32, #tpu.memory_space<vmem>>, %arg7: memref<1x256x16xf32, #tpu.memory_space<vmem>>) attributes {dimension_semantics = [#tpu.dimension_semantics<parallel>], iteration_bounds = array<i64: 2>, scalar_prefetch = 0 : i64, scratch_operands = 0 : i64, tpu.core_type = #tpu.core_type<tc>, window_params = [{transform_indices = @transform_0, window_bounds = array<i64: 1, 256, 16>}, {pipeline_mode = #tpu.pipeline_mode<synchronous>, transform_indices = @transform_1, window_bounds = array<i64: 16, 4>}, {pipeline_mode = #tpu.pipeline_mode<synchronous>, transform_indices = @transform_2, window_bounds = array<i64: 36, 4>}, {pipeline_mode = #tpu.pipeline_mode<synchronous>, transform_indices = @transform_3, window_bounds = array<i64: 4, 16>}, {pipeline_mode = #tpu.pipeline_mode<synchronous>, transform_indices = @transform_4, window_bounds = array<i64: 2, 4>}, {pipeline_mode = #tpu.pipeline_mode<synchronous>, transform_indices = @transform_5, window_bounds = array<i64: 1, 16>}, {transform_indices = @transform_6, window_bounds = array<i64: 1, 256, 16>}]} {
    %c0 = arith.constant 0 : index
    %c0_0 = arith.constant 0 : index
    %c0_1 = arith.constant 0 : index
    %0 = vector.load %arg1[%c0, %c0_0, %c0_1] : memref<1x256x16xf32, #tpu.memory_space<vmem>>, vector<1x256x16xf32>
    %1 = vector.shape_cast %0 : vector<1x256x16xf32> to vector<256x16xf32>
    %2 = arith.truncf %1 : vector<256x16xf32> to vector<256x16xbf16>
    %c0_2 = arith.constant 0 : index
    %c0_3 = arith.constant 0 : index
    %3 = vector.load %arg2[%c0_2, %c0_3] : memref<16x4xbf16, #tpu.memory_space<vmem>>, vector<16x4xbf16>
    %cst = arith.constant dense<0.000000e+00> : vector<256x4xf32>
    %4 = tpu.matmul %2, %3, %cst {dimension_numbers = #tpu.dot_dimension_numbers<[1], [0], [0], [1], [0, 0, 1, 1], [], []>} : vector<256x16xbf16>, vector<16x4xbf16>, vector<256x4xf32> -> vector<256x4xf32>
    %c0_4 = arith.constant 0 : index
    %c0_5 = arith.constant 0 : index
    %5 = vector.load %arg5[%c0_4, %c0_5] : memref<2x4xf32, #tpu.memory_space<vmem>>, vector<1x4xf32>
    %6 = vector.broadcast %5 : vector<1x4xf32> to vector<256x4xf32>
    %7 = arith.addf %4, %6 : vector<256x4xf32>
    %cst_6 = arith.constant 0.000000e+00 : f32
    %8 = vector.broadcast %cst_6 : f32 to vector<256x4xf32>
    %9 = arith.maximumf %7, %8 : vector<256x4xf32>
    %10 = arith.truncf %9 : vector<256x4xf32> to vector<256x4xbf16>
    %11 = vector.shape_cast %10 : vector<256x4xbf16> to vector<16x16x4xbf16>
    %cst_7 = arith.constant 0.000000e+00 : bf16
    %12 = vector.broadcast %cst_7 : bf16 to vector<1x16x4xbf16>
    %cst_8 = arith.constant 0.000000e+00 : bf16
    %13 = vector.broadcast %cst_8 : bf16 to vector<18x1x4xbf16>
    %14 = tpu.concatenate %12, %11, %12 in 0 : vector<1x16x4xbf16>, vector<16x16x4xbf16>, vector<1x16x4xbf16> -> vector<18x16x4xbf16>
    %15 = tpu.concatenate %13, %14, %13 in 1 : vector<18x1x4xbf16>, vector<18x16x4xbf16>, vector<18x1x4xbf16> -> vector<18x18x4xbf16>
    %16 = vector.extract_strided_slice %15 {offsets = [0, 0, 0], sizes = [16, 16, 4], strides = [1, 1, 1]} : vector<18x18x4xbf16> to vector<16x16x4xbf16>
    %17 = vector.shape_cast %16 : vector<16x16x4xbf16> to vector<256x4xbf16>
    %18 = vector.extract_strided_slice %15 {offsets = [0, 1, 0], sizes = [16, 16, 4], strides = [1, 1, 1]} : vector<18x18x4xbf16> to vector<16x16x4xbf16>
    %19 = vector.shape_cast %18 : vector<16x16x4xbf16> to vector<256x4xbf16>
    %20 = vector.extract_strided_slice %15 {offsets = [0, 2, 0], sizes = [16, 16, 4], strides = [1, 1, 1]} : vector<18x18x4xbf16> to vector<16x16x4xbf16>
    %21 = vector.shape_cast %20 : vector<16x16x4xbf16> to vector<256x4xbf16>
    %22 = vector.extract_strided_slice %15 {offsets = [1, 0, 0], sizes = [16, 16, 4], strides = [1, 1, 1]} : vector<18x18x4xbf16> to vector<16x16x4xbf16>
    %23 = vector.shape_cast %22 : vector<16x16x4xbf16> to vector<256x4xbf16>
    %24 = vector.extract_strided_slice %15 {offsets = [1, 1, 0], sizes = [16, 16, 4], strides = [1, 1, 1]} : vector<18x18x4xbf16> to vector<16x16x4xbf16>
    %25 = vector.shape_cast %24 : vector<16x16x4xbf16> to vector<256x4xbf16>
    %26 = vector.extract_strided_slice %15 {offsets = [1, 2, 0], sizes = [16, 16, 4], strides = [1, 1, 1]} : vector<18x18x4xbf16> to vector<16x16x4xbf16>
    %27 = vector.shape_cast %26 : vector<16x16x4xbf16> to vector<256x4xbf16>
    %28 = vector.extract_strided_slice %15 {offsets = [2, 0, 0], sizes = [16, 16, 4], strides = [1, 1, 1]} : vector<18x18x4xbf16> to vector<16x16x4xbf16>
    %29 = vector.shape_cast %28 : vector<16x16x4xbf16> to vector<256x4xbf16>
    %30 = vector.extract_strided_slice %15 {offsets = [2, 1, 0], sizes = [16, 16, 4], strides = [1, 1, 1]} : vector<18x18x4xbf16> to vector<16x16x4xbf16>
    %31 = vector.shape_cast %30 : vector<16x16x4xbf16> to vector<256x4xbf16>
    %32 = vector.extract_strided_slice %15 {offsets = [2, 2, 0], sizes = [16, 16, 4], strides = [1, 1, 1]} : vector<18x18x4xbf16> to vector<16x16x4xbf16>
    %33 = vector.shape_cast %32 : vector<16x16x4xbf16> to vector<256x4xbf16>
    %34 = tpu.concatenate %17, %19, %21, %23, %25, %27, %29, %31, %33 in 1 : vector<256x4xbf16>, vector<256x4xbf16>, vector<256x4xbf16>, vector<256x4xbf16>, vector<256x4xbf16>, vector<256x4xbf16>, vector<256x4xbf16>, vector<256x4xbf16>, vector<256x4xbf16> -> vector<256x36xbf16>
    %c0_9 = arith.constant 0 : index
    %c0_10 = arith.constant 0 : index
    %35 = vector.load %arg3[%c0_9, %c0_10] : memref<36x4xbf16, #tpu.memory_space<vmem>>, vector<36x4xbf16>
    %cst_11 = arith.constant dense<0.000000e+00> : vector<256x4xf32>
    %36 = tpu.matmul %34, %35, %cst_11 {dimension_numbers = #tpu.dot_dimension_numbers<[1], [0], [0], [1], [0, 0, 1, 1], [], []>} : vector<256x36xbf16>, vector<36x4xbf16>, vector<256x4xf32> -> vector<256x4xf32>
    %c1 = arith.constant 1 : index
    %c0_12 = arith.constant 0 : index
    %37 = vector.load %arg5[%c1, %c0_12] : memref<2x4xf32, #tpu.memory_space<vmem>>, vector<1x4xf32>
    %38 = vector.broadcast %37 : vector<1x4xf32> to vector<256x4xf32>
    %39 = arith.addf %36, %38 : vector<256x4xf32>
    %cst_13 = arith.constant 0.000000e+00 : f32
    %40 = vector.broadcast %cst_13 : f32 to vector<256x4xf32>
    %41 = arith.maximumf %39, %40 : vector<256x4xf32>
    %42 = arith.truncf %41 : vector<256x4xf32> to vector<256x4xbf16>
    %c0_14 = arith.constant 0 : index
    %c0_15 = arith.constant 0 : index
    %43 = vector.load %arg4[%c0_14, %c0_15] : memref<4x16xbf16, #tpu.memory_space<vmem>>, vector<4x16xbf16>
    %cst_16 = arith.constant dense<0.000000e+00> : vector<256x16xf32>
    %44 = tpu.matmul %42, %43, %cst_16 {dimension_numbers = #tpu.dot_dimension_numbers<[1], [0], [0], [1], [0, 0, 1, 1], [], []>} : vector<256x4xbf16>, vector<4x16xbf16>, vector<256x16xf32> -> vector<256x16xf32>
    %c0_17 = arith.constant 0 : index
    %c0_18 = arith.constant 0 : index
    %45 = vector.load %arg6[%c0_17, %c0_18] : memref<1x16xf32, #tpu.memory_space<vmem>>, vector<1x16xf32>
    %46 = vector.broadcast %45 : vector<1x16xf32> to vector<256x16xf32>
    %47 = arith.addf %44, %46 : vector<256x16xf32>
    %48 = arith.addf %47, %1 : vector<256x16xf32>
    %cst_19 = arith.constant 0.000000e+00 : f32
    %49 = vector.broadcast %cst_19 : f32 to vector<256x16xf32>
    %50 = arith.maximumf %48, %49 : vector<256x16xf32>
    %c0_20 = arith.constant 0 : index
    %c0_21 = arith.constant 0 : index
    %c0_22 = arith.constant 0 : index
    %51 = vector.load %arg7[%c0_20, %c0_21, %c0_22] : memref<1x256x16xf32, #tpu.memory_space<vmem>>, vector<1x256x16xf32>
    %52 = vector.shape_cast %51 : vector<1x256x16xf32> to vector<256x16xf32>
    %53 = vector.shape_cast %50 : vector<256x16xf32> to vector<1x256x16xf32>
    tpu.vector_store %arg7[%c0_20, %c0_21, %c0_22], %53 {strides = array<i32>} : memref<1x256x16xf32, #tpu.memory_space<vmem>>, vector<1x256x16xf32>,
    return
  }
  func.func @transform_0(%arg0: i32) -> (i32, i32, i32) {
    %c0_i32 = arith.constant 0 : i32
    %c0_i32_0 = arith.constant 0 : i32
    %c0_i32_1 = arith.constant 0 : i32
    return %arg0, %c0_i32, %c0_i32_0 : i32, i32, i32
  }
  func.func @transform_1(%arg0: i32) -> (i32, i32) {
    %c0_i32 = arith.constant 0 : i32
    %c0_i32_0 = arith.constant 0 : i32
    %c0_i32_1 = arith.constant 0 : i32
    return %c0_i32, %c0_i32_0 : i32, i32
  }
  func.func @transform_2(%arg0: i32) -> (i32, i32) {
    %c0_i32 = arith.constant 0 : i32
    %c0_i32_0 = arith.constant 0 : i32
    %c0_i32_1 = arith.constant 0 : i32
    return %c0_i32, %c0_i32_0 : i32, i32
  }
  func.func @transform_3(%arg0: i32) -> (i32, i32) {
    %c0_i32 = arith.constant 0 : i32
    %c0_i32_0 = arith.constant 0 : i32
    %c0_i32_1 = arith.constant 0 : i32
    return %c0_i32, %c0_i32_0 : i32, i32
  }
  func.func @transform_4(%arg0: i32) -> (i32, i32) {
    %c0_i32 = arith.constant 0 : i32
    %c0_i32_0 = arith.constant 0 : i32
    %c0_i32_1 = arith.constant 0 : i32
    return %c0_i32, %c0_i32_0 : i32, i32
  }
  func.func @transform_5(%arg0: i32) -> (i32, i32) {
    %c0_i32 = arith.constant 0 : i32
    %c0_i32_0 = arith.constant 0 : i32
    %c0_i32_1 = arith.constant 0 : i32
    return %c0_i32, %c0_i32_0 : i32, i32
  }
  func.func @transform_6(%arg0: i32) -> (i32, i32, i32) {
    %c0_i32 = arith.constant 0 : i32
    %c0_i32_0 = arith.constant 0 : i32
    %c0_i32_1 = arith.constant 0 : i32
    return %arg0, %c0_i32, %c0_i32_0 : i32, i32, i32
  }
}

</mosaic_0001>

<llo_original>
// kernel: tpu_custom_call.1
$region0: #{tpu_custom_call.1}
  #allocation0 [shape = 'u32[]', space=smem, size = 0x4, offset = 0x4, fixed_abs, tag = 'smem constant byte address 0x4 - core index']
  #allocation1 [shape = 'u32[72,128]{1,0:T(1,128)}', space=vmem, size = 0x9000, scoped, tag = 'internal scratch']
  %s0 = inlined_call_operand.vmem [shape: f32[2,256,16], index: 0, kind: input, shape index: {}]
  %s1 = inlined_call_operand.vmem [shape: bf16[16,4], index: 1, kind: input, shape index: {}]
  %s2 = inlined_call_operand.vmem [shape: bf16[36,4], index: 2, kind: input, shape index: {}]
  %s3 = inlined_call_operand.vmem [shape: bf16[4,16], index: 3, kind: input, shape index: {}]
  %s4 = inlined_call_operand.vmem [shape: f32[2,4], index: 4, kind: input, shape index: {}]
  %s5 = inlined_call_operand.vmem [shape: f32[1,16], index: 5, kind: input, shape index: {}]
  %s6 = inlined_call_operand.vmem [shape: f32[2,256,16], index: 6, kind: output, shape index: {}]
  %s7 = sld [smem:[#allocation0]]
  $region57: #{tpu_custom_call.1} parent=0
    _
  %s9 = ssub.s32 1, %s7
  %s10 = scalar_select 0, %s9, %s7
  loop: start=0, step=1, limit=4
  $region2: #{tpu_custom_call.1} parent=0 // loop_pre_header
    _
  $region3: #{tpu_custom_call.1} parent=0 // loop_header
    %s12 = sphi 0, %s16
    %p13 = scmp.ge.s32.totalorder %s12, 4
    %s22 = sphi 0, %s24
    %s25 = sphi 0, %s22
    %s26 = sphi 0, %s25
    %s42 = sphi 0, %s26
    %s46 = sphi 0, %s46
    %s48 = sphi 0, %s46
    %s49 = sphi 0, %s48
    %s63 = sphi 0, %s49
    %s67 = sphi 0, %s67
    %s69 = sphi 0, %s67
    %s70 = sphi 0, %s69
    %s84 = sphi 0, %s70
    %s88 = sphi 0, %s88
    %s90 = sphi 0, %s88
    %s91 = sphi 0, %s90
    %s105 = sphi 0, %s91
    %s109 = sphi 0, %s109
    %s111 = sphi 0, %s109
    %s112 = sphi 0, %s111
    %s126 = sphi 0, %s112
    %s130 = sphi 0, %s130
    %s132 = sphi 0, %s130
    %s133 = sphi 0, %s132
    %s147 = sphi 0, %s133
    %s153 = sphi 0, %s155
    %s156 = sphi 0, %s153
    %s157 = sphi 0, %s156
    %s173 = sphi 0, %s157
  $region4: #{tpu_custom_call.1} parent=0 // loop_header_branch
    %15 = sbr.rel (%p13) target = $region8
  $region5: #{tpu_custom_call.1} parent=0 // loop_body
    %s17 = ssub.s32 %s12, 1
    %s18 = ssub.s32 %s12, 2
    %s19 = sadd.s32 %s12, 1
    %s20 = ssub.s32 %s12, %s19
    %p21 = scmp.eq.s32.totalorder %s20, 0
    %s23 = sadd.s32 %s22, 1
    %s24 = scalar_select %p21, %s22, %s23
    %p27 = pneg %p21
    %p28 = scmp.eq.s32.totalorder %s12, 1
    %p29 = por %p27, %p28
    %p30 = scmp.ne.s32.totalorder %s22, %s25
    %p31 = scmp.eq.s32.totalorder %s12, 0
    %p32 = por %p30, %p31
    %p33 = scmp.ne.s32.totalorder %s22, %s25
    %p34 = scmp.eq.s32.totalorder %s17, 1
    %p35 = por %p33, %p34
    %p36 = scmp.ne.s32.totalorder %s25, %s26
    %p37 = scmp.eq.s32.totalorder %s17, 0
    %p38 = por %p36, %p37
    %p39 = scmp.ne.s32.totalorder %s25, %s26
    %p40 = scmp.eq.s32.totalorder %s18, 1
    %p41 = por %p39, %p40
    %p43 = scmp.ne.s32.totalorder %s26, %s42
    %p44 = scmp.eq.s32.totalorder %s18, 0
    %p45 = por %p43, %p44
    %s47 = sadd.s32 %s46, 1
    %p50 = scmp.eq.s32.totalorder %s12, 1
    %p51 = scmp.ne.s32.totalorder %s46, %s48
    %p52 = scmp.eq.s32.totalorder %s12, 0
    %p53 = por %p51, %p52
    %p54 = scmp.ne.s32.totalorder %s46, %s48
    %p55 = scmp.eq.s32.totalorder %s17, 1
    %p56 = por %p54, %p55
    %p57 = scmp.ne.s32.totalorder %s48, %s49
    %p58 = scmp.eq.s32.totalorder %s17, 0
    %p59 = por %p57, %p58
    %p60 = scmp.ne.s32.totalorder %s48, %s49
    %p61 = scmp.eq.s32.totalorder %s18, 1
    %p62 = por %p60, %p61
    %p64 = scmp.ne.s32.totalorder %s49, %s63
    %p65 = scmp.eq.s32.totalorder %s18, 0
    %p66 = por %p64, %p65
    %s68 = sadd.s32 %s67, 1
    %p71 = scmp.eq.s32.totalorder %s12, 1
    %p72 = scmp.ne.s32.totalorder %s67, %s69
    %p73 = scmp.eq.s32.totalorder %s12, 0
    %p74 = por %p72, %p73
    %p75 = scmp.ne.s32.totalorder %s67, %s69
    %p76 = scmp.eq.s32.totalorder %s17, 1
    %p77 = por %p75, %p76
    %p78 = scmp.ne.s32.totalorder %s69, %s70
    %p79 = scmp.eq.s32.totalorder %s17, 0
    %p80 = por %p78, %p79
    %p81 = scmp.ne.s32.totalorder %s69, %s70
    %p82 = scmp.eq.s32.totalorder %s18, 1
    %p83 = por %p81, %p82
    %p85 = scmp.ne.s32.totalorder %s70, %s84
    %p86 = scmp.eq.s32.totalorder %s18, 0
    %p87 = por %p85, %p86
    %s89 = sadd.s32 %s88, 1
    %p92 = scmp.eq.s32.totalorder %s12, 1
    %p93 = scmp.ne.s32.totalorder %s88, %s90
    %p94 = scmp.eq.s32.totalorder %s12, 0
    %p95 = por %p93, %p94
    %p96 = scmp.ne.s32.totalorder %s88, %s90
    %p97 = scmp.eq.s32.totalorder %s17, 1
    %p98 = por %p96, %p97
    %p99 = scmp.ne.s32.totalorder %s90, %s91
    %p100 = scmp.eq.s32.totalorder %s17, 0
    %p101 = por %p99, %p100
    %p102 = scmp.ne.s32.totalorder %s90, %s91
    %p103 = scmp.eq.s32.totalorder %s18, 1
    %p104 = por %p102, %p103
    %p106 = scmp.ne.s32.totalorder %s91, %s105
    %p107 = scmp.eq.s32.totalorder %s18, 0
    %p108 = por %p106, %p107
    %s110 = sadd.s32 %s109, 1
    %p113 = scmp.eq.s32.totalorder %s12, 1
    %p114 = scmp.ne.s32.totalorder %s109, %s111
    %p115 = scmp.eq.s32.totalorder %s12, 0
    %p116 = por %p114, %p115
    %p117 = scmp.ne.s32.totalorder %s109, %s111
    %p118 = scmp.eq.s32.totalorder %s17, 1
    %p119 = por %p117, %p118
    %p120 = scmp.ne.s32.totalorder %s111, %s112
    %p121 = scmp.eq.s32.totalorder %s17, 0
    %p122 = por %p120, %p121
    %p123 = scmp.ne.s32.totalorder %s111, %s112
    %p124 = scmp.eq.s32.totalorder %s18, 1
    %p125 = por %p123, %p124
    %p127 = scmp.ne.s32.totalorder %s112, %s126
    %p128 = scmp.eq.s32.totalorder %s18, 0
    %p129 = por %p127, %p128
    %s131 = sadd.s32 %s130, 1
    %p134 = scmp.eq.s32.totalorder %s12, 1
    %p135 = scmp.ne.s32.totalorder %s130, %s132
    %p136 = scmp.eq.s32.totalorder %s12, 0
    %p137 = por %p135, %p136
    %p138 = scmp.ne.s32.totalorder %s130, %s132
    %p139 = scmp.eq.s32.totalorder %s17, 1
    %p140 = por %p138, %p139
    %p141 = scmp.ne.s32.totalorder %s132, %s133
    %p142 = scmp.eq.s32.totalorder %s17, 0
    %p143 = por %p141, %p142
    %p144 = scmp.ne.s32.totalorder %s132, %s133
    %p145 = scmp.eq.s32.totalorder %s18, 1
    %p146 = por %p144, %p145
    %p148 = scmp.ne.s32.totalorder %s133, %s147
    %p149 = scmp.eq.s32.totalorder %s18, 0
    %p150 = por %p148, %p149
    %s151 = ssub.s32 %s12, %s19
    %p152 = scmp.eq.s32.totalorder %s151, 0
    %s154 = sadd.s32 %s153, 1
    %s155 = scalar_select %p152, %s153, %s154
    %p158 = pneg %p152
    %p159 = scmp.eq.s32.totalorder %s12, 1
    %p160 = por %p158, %p159
    %p161 = scmp.ne.s32.totalorder %s153, %s156
    %p162 = scmp.eq.s32.totalorder %s12, 0
    %p163 = por %p161, %p162
    %p164 = scmp.ne.s32.totalorder %s153, %s156
    %p165 = scmp.eq.s32.totalorder %s17, 1
    %p166 = por %p164, %p165
    %p167 = scmp.ne.s32.totalorder %s156, %s157
    %p168 = scmp.eq.s32.totalorder %s17, 0
    %p169 = por %p167, %p168
    %p170 = scmp.ne.s32.totalorder %s156, %s157
    %p171 = scmp.eq.s32.totalorder %s18, 1
    %p172 = por %p170, %p171
    %p174 = scmp.ne.s32.totalorder %s157, %s173
    %p175 = scmp.eq.s32.totalorder %s18, 0
    %p176 = por %p174, %p175
    %p177 = scmp.le.s32.totalorder 1, %s12
    %p178 = scmp.lt.s32.totalorder %s12, 3
    %p179 = pnand %p177, %p178
    %p180 = pneg %p179
    // Predicated region
    $region9: #{tpu_custom_call.1} parent=5 // pred_check
      _
    $region10: #{tpu_custom_call.1} parent=5 // pred_check_branch
      %182 = sbr.rel (%p179) target = $region12
    $region11: #{tpu_custom_call.1} parent=5 // pred_region
      %s183 = ssub.s32 %s12, 1
      // Predicated region
      $region13: #{tpu_custom_call.1} parent=11 // pred_check
        %p184 = pneg %p59
      $region14: #{tpu_custom_call.1} parent=11 // pred_check_branch
        %186 = sbr.rel (%p184) target = $region16
      $region15: #{tpu_custom_call.1} parent=11 // pred_region
        _
      $region16: #{tpu_custom_call.1} parent=11 // pred_fallthru
        _
      // Predicated region
      $region17: #{tpu_custom_call.1} parent=11 // pred_check
        %p187 = pneg %p80
      $region18: #{tpu_custom_call.1} parent=11 // pred_check_branch
        %189 = sbr.rel (%p187) target = $region20
      $region19: #{tpu_custom_call.1} parent=11 // pred_region
        _
      $region20: #{tpu_custom_call.1} parent=11 // pred_fallthru
        _
      // Predicated region
      $region21: #{tpu_custom_call.1} parent=11 // pred_check
        %p190 = pneg %p101
      $region22: #{tpu_custom_call.1} parent=11 // pred_check_branch
        %192 = sbr.rel (%p190) target = $region24
      $region23: #{tpu_custom_call.1} parent=11 // pred_region
        _
      $region24: #{tpu_custom_call.1} parent=11 // pred_fallthru
        _
      // Predicated region
      $region25: #{tpu_custom_call.1} parent=11 // pred_check
        %p193 = pneg %p122
      $region26: #{tpu_custom_call.1} parent=11 // pred_check_branch
        %195 = sbr.rel (%p193) target = $region28
      $region27: #{tpu_custom_call.1} parent=11 // pred_region
        _
      $region28: #{tpu_custom_call.1} parent=11 // pred_fallthru
        _
      // Predicated region
      $region29: #{tpu_custom_call.1} parent=11 // pred_check
        %p196 = pneg %p143
      $region30: #{tpu_custom_call.1} parent=11 // pred_check_branch
        %198 = sbr.rel (%p196) target = $region32
      $region31: #{tpu_custom_call.1} parent=11 // pred_region
        _
      $region32: #{tpu_custom_call.1} parent=11 // pred_fallthru
        _
    $region12: #{tpu_custom_call.1} parent=5 // pred_fallthru
      _
    %p199 = scmp.lt.s32.totalorder %s12, 2
    // Predicated region
    $region33: #{tpu_custom_call.1} parent=5 // pred_check
      %p200 = pneg %p199
    $region34: #{tpu_custom_call.1} parent=5 // pred_check_branch
      %202 = sbr.rel (%p200) target = $region36
    $region35: #{tpu_custom_call.1} parent=5 // pred_region
      // Predicated region
      $region37: #{tpu_custom_call.1} parent=35 // pred_check
        %p203 = pneg %p32
      $region38: #{tpu_custom_call.1} parent=35 // pred_check_branch
        %205 = sbr.rel (%p203) target = $region40
      $region39: #{tpu_custom_call.1} parent=35 // pred_region
        %p206 = scmp.lt.s32.totalorder %s12, 1
        %s207 = scalar_select %p206, %s12, 1
        %s208 = smul.addr %s207, 32
        %s209 = smul.addr %s208, 8
        %s210 = scalar_lea.vmem %s0, %s209
      $region40: #{tpu_custom_call.1} parent=35 // pred_fallthru
        _
    $region36: #{tpu_custom_call.1} parent=5 // pred_fallthru
      _
    %p211 = scmp.le.s32.totalorder 1, %s12
    %p212 = scmp.lt.s32.totalorder %s12, 3
    %p213 = pnand %p211, %p212
    %p214 = pneg %p213
    // Predicated region
    $region41: #{tpu_custom_call.1} parent=5 // pred_check
      _
    $region42: #{tpu_custom_call.1} parent=5 // pred_check_branch
      %216 = sbr.rel (%p213) target = $region44
    $region43: #{tpu_custom_call.1} parent=5 // pred_region
      %s217 = ssub.s32 %s12, 1
      %p218 = scmp.lt.s32.totalorder %s17, 1
      %s219 = scalar_select %p218, %s17, 1
      %s220 = smul.addr %s219, 32
      %s221 = smul.addr %s220, 8
      %s222 = scalar_lea.vmem %s0, %s221
      %p223 = pneg %p38
      %p224 = pneg %p35
      %p225 = pneg %p59
      %p226 = pneg %p56
      %p227 = pneg %p80
      %p228 = pneg %p77
      %p229 = pneg %p101
      %p230 = pneg %p98
      %p231 = pneg %p122
      %p232 = pneg %p119
      %p233 = pneg %p143
      %p234 = pneg %p140
      %p235 = pneg %p169
      %p236 = pneg %p166
      %p237 = scmp.lt.s32.totalorder %s17, 1
      %s238 = scalar_select %p237, %s17, 1
      %s239 = smul.addr %s238, 32
      %s240 = smul.addr %s239, 8
      %s241 = scalar_lea.vmem %s6, %s240
      %p242 = scmp.lt.s32.totalorder %s17, 1
      %s243 = scalar_select %p242, %s17, 1
      %s244 = smul.addr %s243, 32
      %s245 = smul.addr %s244, 8
      %s246 = scalar_lea.vmem %s0, %s245
      %p247 = scmp.lt.s32.totalorder %s17, 1
      %s248 = scalar_select %p247, %s17, 1
      %s249 = smul.addr %s248, 32
      %s250 = smul.addr %s249, 8
      %s251 = scalar_lea.vmem %s6, %s250
      %v253 = vld [vmem:[%s246] sm:$0xff]
      %v254 = vld [vmem:[%s246 + $0x8] sm:$0xff]
      %v255 = vld [vmem:[%s246 + $0x10] sm:$0xff]
      %v256 = vld [vmem:[%s246 + $0x18] sm:$0xff]
      %v257 = vld [vmem:[%s246 + $0x20] sm:$0xff]
      %v258 = vld [vmem:[%s246 + $0x28] sm:$0xff]
      %v259 = vld [vmem:[%s246 + $0x30] sm:$0xff]
      %v260 = vld [vmem:[%s246 + $0x38] sm:$0xff]
      %v261 = vld [vmem:[%s246 + $0x40] sm:$0xff]
      %v262 = vld [vmem:[%s246 + $0x48] sm:$0xff]
      %v263 = vld [vmem:[%s246 + $0x50] sm:$0xff]
      %v264 = vld [vmem:[%s246 + $0x58] sm:$0xff]
      %v265 = vld [vmem:[%s246 + $0x60] sm:$0xff]
      %v266 = vld [vmem:[%s246 + $0x68] sm:$0xff]
      %v267 = vld [vmem:[%s246 + $0x70] sm:$0xff]
      %v268 = vld [vmem:[%s246 + $0x78] sm:$0xff]
      %v269 = vld [vmem:[%s246 + $0x80] sm:$0xff]
      %v270 = vld [vmem:[%s246 + $0x88] sm:$0xff]
      %v271 = vld [vmem:[%s246 + $0x90] sm:$0xff]
      %v272 = vld [vmem:[%s246 + $0x98] sm:$0xff]
      %v273 = vld [vmem:[%s246 + $0xa0] sm:$0xff]
      %v274 = vld [vmem:[%s246 + $0xa8] sm:$0xff]
      %v275 = vld [vmem:[%s246 + $0xb0] sm:$0xff]
      %v276 = vld [vmem:[%s246 + $0xb8] sm:$0xff]
      %v277 = vld [vmem:[%s246 + $0xc0] sm:$0xff]
      %v278 = vld [vmem:[%s246 + $0xc8] sm:$0xff]
      %v279 = vld [vmem:[%s246 + $0xd0] sm:$0xff]
      %v280 = vld [vmem:[%s246 + $0xd8] sm:$0xff]
      %v281 = vld [vmem:[%s246 + $0xe0] sm:$0xff]
      %v282 = vld [vmem:[%s246 + $0xe8] sm:$0xff]
      %v283 = vld [vmem:[%s246 + $0xf0] sm:$0xff]
      %v284 = vld [vmem:[%s246 + $0xf8] sm:$0xff]
      %v285 = vpack.c.bf16 %v254, %v253
      %v286 = vpack.c.bf16 %v256, %v255
      %v287 = vpack.c.bf16 %v258, %v257
      %v288 = vpack.c.bf16 %v260, %v259
      %v289 = vpack.c.bf16 %v262, %v261
      %v290 = vpack.c.bf16 %v264, %v263
      %v291 = vpack.c.bf16 %v266, %v265
      %v292 = vpack.c.bf16 %v268, %v267
      %v293 = vpack.c.bf16 %v270, %v269
      %v294 = vpack.c.bf16 %v272, %v271
      %v295 = vpack.c.bf16 %v274, %v273
      %v296 = vpack.c.bf16 %v276, %v275
      %v297 = vpack.c.bf16 %v278, %v277
      %v298 = vpack.c.bf16 %v280, %v279
      %v299 = vpack.c.bf16 %v282, %v281
      %v300 = vpack.c.bf16 %v284, %v283
      %v301 = vld [vmem:[%s1] sm:$0xf]
      %v302 = vld [vmem:[%s1 + $0x4] sm:$0xf]
      %v303 = vld [vmem:[%s4] sm:$0x1]
      %v304 = vperm.slane %v303, 0
      %v307 = vunpack.c.l.b16 %v301
      %v308 = vunpack.c.l.b16 %v302
      %v309 = vpack.c.b16 %v308, %v307
      %vm311 = vcmask 130048
      %v313 = vsel %vm311, %v285, 0
      %v316 = vsel %vm311, %v286, 0
      %v319 = vsel %vm311, %v287, 0
      %v322 = vsel %vm311, %v288, 0
      %v325 = vsel %vm311, %v289, 0
      %v328 = vsel %vm311, %v290, 0
      %v331 = vsel %vm311, %v291, 0
      %v334 = vsel %vm311, %v292, 0
      %v337 = vsel %vm311, %v293, 0
      %v340 = vsel %vm311, %v294, 0
      %v343 = vsel %vm311, %v295, 0
      %v346 = vsel %vm311, %v296, 0
      %v349 = vsel %vm311, %v297, 0
      %v352 = vsel %vm311, %v298, 0
      %v355 = vsel %vm311, %v299, 0
      %v358 = vsel %vm311, %v300, 0
      %360 = vmatpush.bf16.msra.mxu0 0
      %361 = vmatpush.bf16.msra.mxu0 0
      %362 = vmatpush.bf16.msra.mxu0 0
      %363 = vmatpush.bf16.msra.mxu0 0
      %364 = vmatpush.bf16.msra.mxu0 0
      %365 = vmatpush.bf16.msra.mxu0 0
      %366 = vmatpush.bf16.msra.mxu0 0
      %367 = vmatpush.bf16.msra.mxu0 %v309
      %368 = vmatmul.bf16.gmra.mxu0 %v313
      %v369 = vpop.f32.mrf.mxu0
      %v370 = vadd.f32 %v304, %v369
      %v371 = vpop.f32.mrf.mxu0
      %v372 = vadd.f32 %v304, %v371
      %373 = vmatmul.bf16.gmra.mxu0 %v316
      %v374 = vpop.f32.mrf.mxu0
      %v375 = vadd.f32 %v304, %v374
      %v376 = vpop.f32.mrf.mxu0
      %v377 = vadd.f32 %v304, %v376
      %378 = vmatmul.bf16.gmra.mxu0 %v319
      %v379 = vpop.f32.mrf.mxu0
      %v380 = vadd.f32 %v304, %v379
      %v381 = vpop.f32.mrf.mxu0
      %v382 = vadd.f32 %v304, %v381
      %383 = vmatmul.bf16.gmra.mxu0 %v322
      %v384 = vpop.f32.mrf.mxu0
      %v385 = vadd.f32 %v304, %v384
      %v386 = vpop.f32.mrf.mxu0
      %v387 = vadd.f32 %v304, %v386
      %388 = vmatmul.bf16.gmra.mxu0 %v325
      %v389 = vpop.f32.mrf.mxu0
      %v390 = vadd.f32 %v304, %v389
      %v391 = vpop.f32.mrf.mxu0
      %v392 = vadd.f32 %v304, %v391
      %393 = vmatmul.bf16.gmra.mxu0 %v328
      %v394 = vpop.f32.mrf.mxu0
      %v395 = vadd.f32 %v304, %v394
      %v396 = vpop.f32.mrf.mxu0
      %v397 = vadd.f32 %v304, %v396
      %398 = vmatmul.bf16.gmra.mxu0 %v331
      %v399 = vpop.f32.mrf.mxu0
      %v400 = vadd.f32 %v304, %v399
      %v401 = vpop.f32.mrf.mxu0
      %v402 = vadd.f32 %v304, %v401
      %403 = vmatmul.bf16.gmra.mxu0 %v334
      %v404 = vpop.f32.mrf.mxu0
      %v405 = vadd.f32 %v304, %v404
      %v406 = vpop.f32.mrf.mxu0
      %v407 = vadd.f32 %v304, %v406
      %408 = vmatmul.bf16.gmra.mxu0 %v337
      %v409 = vpop.f32.mrf.mxu0
      %v410 = vadd.f32 %v304, %v409
      %v411 = vpop.f32.mrf.mxu0
      %v412 = vadd.f32 %v304, %v411
      %413 = vmatmul.bf16.gmra.mxu0 %v340
      %v414 = vpop.f32.mrf.mxu0
      %v415 = vadd.f32 %v304, %v414
      %v416 = vpop.f32.mrf.mxu0
      %v417 = vadd.f32 %v304, %v416
      %418 = vmatmul.bf16.gmra.mxu0 %v343
      %v419 = vpop.f32.mrf.mxu0
      %v420 = vadd.f32 %v304, %v419
      %v421 = vpop.f32.mrf.mxu0
      %v422 = vadd.f32 %v304, %v421
      %423 = vmatmul.bf16.gmra.mxu0 %v346
      %v424 = vpop.f32.mrf.mxu0
      %v425 = vadd.f32 %v304, %v424
      %v426 = vpop.f32.mrf.mxu0
      %v427 = vadd.f32 %v304, %v426
      %428 = vmatmul.bf16.gmra.mxu0 %v349
      %v429 = vpop.f32.mrf.mxu0
      %v430 = vadd.f32 %v304, %v429
      %v431 = vpop.f32.mrf.mxu0
      %v432 = vadd.f32 %v304, %v431
      %433 = vmatmul.bf16.gmra.mxu0 %v352
      %v434 = vpop.f32.mrf.mxu0
      %v435 = vadd.f32 %v304, %v434
      %v436 = vpop.f32.mrf.mxu0
      %v437 = vadd.f32 %v304, %v436
      %438 = vmatmul.bf16.gmra.mxu0 %v355
      %v439 = vpop.f32.mrf.mxu0
      %v440 = vadd.f32 %v304, %v439
      %v441 = vpop.f32.mrf.mxu0
      %v442 = vadd.f32 %v304, %v441
      %443 = vmatmul.bf16.gmra.mxu0 %v358
      %v444 = vpop.f32.mrf.mxu0
      %v445 = vadd.f32 %v304, %v444
      %v446 = vpop.f32.mrf.mxu0
      %v447 = vadd.f32 %v304, %v446
      %448 = vdwg.mxu0
      %v449 = vmax.f32 %v370, 0.0
      %v450 = vmax.f32 %v372, 0.0
      %v451 = vmax.f32 %v375, 0.0
      %v452 = vmax.f32 %v377, 0.0
      %v453 = vmax.f32 %v380, 0.0
      %v454 = vmax.f32 %v382, 0.0
      %v455 = vmax.f32 %v385, 0.0
      %v456 = vmax.f32 %v387, 0.0
      %v457 = vmax.f32 %v390, 0.0
      %v458 = vmax.f32 %v392, 0.0
      %v459 = vmax.f32 %v395, 0.0
      %v460 = vmax.f32 %v397, 0.0
      %v461 = vmax.f32 %v400, 0.0
      %v462 = vmax.f32 %v402, 0.0
      %v463 = vmax.f32 %v405, 0.0
      %v464 = vmax.f32 %v407, 0.0
      %v465 = vmax.f32 %v410, 0.0
      %v466 = vmax.f32 %v412, 0.0
      %v467 = vmax.f32 %v415, 0.0
      %v468 = vmax.f32 %v417, 0.0
      %v469 = vmax.f32 %v420, 0.0
      %v470 = vmax.f32 %v422, 0.0
      %v471 = vmax.f32 %v425, 0.0
      %v472 = vmax.f32 %v427, 0.0
      %v473 = vmax.f32 %v430, 0.0
      %v474 = vmax.f32 %v432, 0.0
      %v475 = vmax.f32 %v435, 0.0
      %v476 = vmax.f32 %v437, 0.0
      %v477 = vmax.f32 %v440, 0.0
      %v478 = vmax.f32 %v442, 0.0
      %v479 = vmax.f32 %v445, 0.0
      %v480 = vmax.f32 %v447, 0.0
      %v481 = vpack.c.bf16 %v449, %v449
      %v482 = vpack.c.bf16 %v450, %v450
      %v483 = vpack.c.bf16 %v451, %v451
      %v484 = vpack.c.bf16 %v452, %v452
      %v485 = vpack.c.bf16 %v453, %v453
      %v486 = vpack.c.bf16 %v454, %v454
      %v487 = vpack.c.bf16 %v455, %v455
      %v488 = vpack.c.bf16 %v456, %v456
      %v489 = vpack.c.bf16 %v457, %v457
      %v490 = vpack.c.bf16 %v458, %v458
      %v491 = vpack.c.bf16 %v459, %v459
      %v492 = vpack.c.bf16 %v460, %v460
      %v493 = vpack.c.bf16 %v461, %v461
      %v494 = vpack.c.bf16 %v462, %v462
      %v495 = vpack.c.bf16 %v463, %v463
      %v496 = vpack.c.bf16 %v464, %v464
      %v497 = vpack.c.bf16 %v465, %v465
      %v498 = vpack.c.bf16 %v466, %v466
      %v499 = vpack.c.bf16 %v467, %v467
      %v500 = vpack.c.bf16 %v468, %v468
      %v501 = vpack.c.bf16 %v469, %v469
      %v502 = vpack.c.bf16 %v470, %v470
      %v503 = vpack.c.bf16 %v471, %v471
      %v504 = vpack.c.bf16 %v472, %v472
      %v505 = vpack.c.bf16 %v473, %v473
      %v506 = vpack.c.bf16 %v474, %v474
      %v507 = vpack.c.bf16 %v475, %v475
      %v508 = vpack.c.bf16 %v476, %v476
      %v509 = vpack.c.bf16 %v477, %v477
      %v510 = vpack.c.bf16 %v478, %v478
      %v511 = vpack.c.bf16 %v479, %v479
      %v512 = vpack.c.bf16 %v480, %v480
      %v545 = vunpack.c.l.b16 %v481
      %v546 = vunpack.c.l.b16 %v482
      %v547 = vunpack.c.l.b16 %v483
      %v548 = vunpack.c.l.b16 %v484
      %v549 = vunpack.c.l.b16 %v485
      %v550 = vunpack.c.l.b16 %v486
      %v551 = vunpack.c.l.b16 %v487
      %v552 = vunpack.c.l.b16 %v488
      %v553 = vunpack.c.l.b16 %v489
      %v554 = vunpack.c.l.b16 %v490
      %v555 = vunpack.c.l.b16 %v491
      %v556 = vunpack.c.l.b16 %v492
      %v557 = vunpack.c.l.b16 %v493
      %v558 = vunpack.c.l.b16 %v494
      %v559 = vunpack.c.l.b16 %v495
      %v560 = vunpack.c.l.b16 %v496
      %v561 = vunpack.c.l.b16 %v497
      %v562 = vunpack.c.l.b16 %v498
      %v563 = vunpack.c.l.b16 %v499
      %v564 = vunpack.c.l.b16 %v500
      %v565 = vunpack.c.l.b16 %v501
      %v566 = vunpack.c.l.b16 %v502
      %v567 = vunpack.c.l.b16 %v503
      %v568 = vunpack.c.l.b16 %v504
      %v569 = vunpack.c.l.b16 %v505
      %v570 = vunpack.c.l.b16 %v506
      %v571 = vunpack.c.l.b16 %v507
      %v572 = vunpack.c.l.b16 %v508
      %v573 = vunpack.c.l.b16 %v509
      %v574 = vunpack.c.l.b16 %v510
      %v575 = vunpack.c.l.b16 %v511
      %v576 = vunpack.c.l.b16 %v512
      %v577 = vpack.c.b16 %v546, %v545
      %v578 = vpack.c.b16 %v548, %v547
      %v579 = vpack.c.b16 %v550, %v549
      %v580 = vpack.c.b16 %v552, %v551
      %v581 = vpack.c.b16 %v554, %v553
      %v582 = vpack.c.b16 %v556, %v555
      %v583 = vpack.c.b16 %v558, %v557
      %v584 = vpack.c.b16 %v560, %v559
      %v585 = vpack.c.b16 %v562, %v561
      %v586 = vpack.c.b16 %v564, %v563
      %v587 = vpack.c.b16 %v566, %v565
      %v588 = vpack.c.b16 %v568, %v567
      %v589 = vpack.c.b16 %v570, %v569
      %v590 = vpack.c.b16 %v572, %v571
      %v591 = vpack.c.b16 %v574, %v573
      %v592 = vpack.c.b16 %v576, %v575
      %v594 = vshrl.u32 0, 16
      %v596 = vrot.slane %v594, 7
      %v597 = vshll.u32 0, 16
      %v599 = vor.u32 %v596, %v597
      %v601 = vshrl.u32 %v577, 16
      %v603 = vrot.slane %v601, 7
      %v604 = vshll.u32 %v577, 16
      %v606 = vor.u32 %v603, %v604
      %v608 = vshrl.u32 %v578, 16
      %v610 = vrot.slane %v608, 7
      %v611 = vshll.u32 %v578, 16
      %v613 = vor.u32 %v610, %v611
      %v615 = vshrl.u32 %v579, 16
      %v617 = vrot.slane %v615, 7
      %v618 = vshll.u32 %v579, 16
      %v620 = vor.u32 %v617, %v618
      %v622 = vshrl.u32 %v580, 16
      %v624 = vrot.slane %v622, 7
      %v625 = vshll.u32 %v580, 16
      %v627 = vor.u32 %v624, %v625
      %v629 = vshrl.u32 %v581, 16
      %v631 = vrot.slane %v629, 7
      %v632 = vshll.u32 %v581, 16
      %v634 = vor.u32 %v631, %v632
      %v636 = vshrl.u32 %v582, 16
      %v638 = vrot.slane %v636, 7
      %v639 = vshll.u32 %v582, 16
      %v641 = vor.u32 %v638, %v639
      %v643 = vshrl.u32 %v583, 16
      %v645 = vrot.slane %v643, 7
      %v646 = vshll.u32 %v583, 16
      %v648 = vor.u32 %v645, %v646
      %v650 = vshrl.u32 %v584, 16
      %v652 = vrot.slane %v650, 7
      %v653 = vshll.u32 %v584, 16
      %v655 = vor.u32 %v652, %v653
      %v657 = vshrl.u32 %v585, 16
      %v659 = vrot.slane %v657, 7
      %v660 = vshll.u32 %v585, 16
      %v662 = vor.u32 %v659, %v660
      %v664 = vshrl.u32 %v586, 16
      %v666 = vrot.slane %v664, 7
      %v667 = vshll.u32 %v586, 16
      %v669 = vor.u32 %v666, %v667
      %v671 = vshrl.u32 %v587, 16
      %v673 = vrot.slane %v671, 7
      %v674 = vshll.u32 %v587, 16
      %v676 = vor.u32 %v673, %v674
      %v678 = vshrl.u32 %v588, 16
      %v680 = vrot.slane %v678, 7
      %v681 = vshll.u32 %v588, 16
      %v683 = vor.u32 %v680, %v681
      %v685 = vshrl.u32 %v589, 16
      %v687 = vrot.slane %v685, 7
      %v688 = vshll.u32 %v589, 16
      %v690 = vor.u32 %v687, %v688
      %v692 = vshrl.u32 %v590, 16
      %v694 = vrot.slane %v692, 7
      %v695 = vshll.u32 %v590, 16
      %v697 = vor.u32 %v694, %v695
      %v699 = vshrl.u32 %v591, 16
      %v701 = vrot.slane %v699, 7
      %v702 = vshll.u32 %v591, 16
      %v704 = vor.u32 %v701, %v702
      %v706 = vshrl.u32 %v592, 16
      %v708 = vrot.slane %v706, 7
      %v709 = vshll.u32 %v592, 16
      %v711 = vor.u32 %v708, %v709
      %vm746 = vcmask 1040384
      %vm747 = vsmask.f32 256
      %vm748 = vmand %vm746, %vm747
      %v749 = vsel %vm748, 0, %v599
      %v750 = vsel %vm748, 0, %v606
      %v751 = vsel %vm748, 0, %v613
      %v752 = vsel %vm748, 0, %v620
      %v753 = vsel %vm748, 0, %v627
      %v754 = vsel %vm748, 0, %v634
      %v755 = vsel %vm748, 0, %v641
      %v756 = vsel %vm748, 0, %v648
      %v757 = vsel %vm748, 0, %v655
      %v758 = vsel %vm748, 0, %v662
      %v759 = vsel %vm748, 0, %v669
      %v760 = vsel %vm748, 0, %v676
      %v761 = vsel %vm748, 0, %v683
      %v762 = vsel %vm748, 0, %v690
      %v763 = vsel %vm748, 0, %v697
      %v764 = vsel %vm748, 0, %v704
      %v765 = vsel %vm748, 0, %v711
      %v766 = vsel %vm748, %v596, 0
      %v767 = vsel %vm748, %v603, 0
      %v768 = vsel %vm748, %v610, 0
      %v769 = vsel %vm748, %v617, 0
      %v770 = vsel %vm748, %v624, 0
      %v771 = vsel %vm748, %v631, 0
      %v772 = vsel %vm748, %v638, 0
      %v773 = vsel %vm748, %v645, 0
      %v774 = vsel %vm748, %v652, 0
      %v775 = vsel %vm748, %v659, 0
      %v776 = vsel %vm748, %v666, 0
      %v777 = vsel %vm748, %v673, 0
      %v778 = vsel %vm748, %v680, 0
      %v779 = vsel %vm748, %v687, 0
      %v780 = vsel %vm748, %v694, 0
      %v781 = vsel %vm748, %v701, 0
      %v782 = vsel %vm748, %v708, 0
      %vm783 = vsmask.f32 7424
      %v785 = vshrl.u32 %v749, 16
      %v787 = vshll.u32 %v749, 16
      %v789 = vrot.slane %v787, 1
      %v790 = vor.u32 %v785, %v789
      %v792 = vshll.u32 %v766, 16
      %v794 = vrot.slane %v792, 1
      %v795 = vsel %vm783, %v790, %v794
      %v797 = vshrl.u32 %v750, 16
      %v799 = vshll.u32 %v750, 16
      %v801 = vrot.slane %v799, 1
      %v802 = vor.u32 %v797, %v801
      %v804 = vshll.u32 %v767, 16
      %v806 = vrot.slane %v804, 1
      %v807 = vsel %vm783, %v802, %v806
      %v809 = vshrl.u32 %v751, 16
      %v811 = vshll.u32 %v751, 16
      %v813 = vrot.slane %v811, 1
      %v814 = vor.u32 %v809, %v813
      %v816 = vshll.u32 %v768, 16
      %v818 = vrot.slane %v816, 1
      %v819 = vsel %vm783, %v814, %v818
      %v821 = vshrl.u32 %v752, 16
      %v823 = vshll.u32 %v752, 16
      %v825 = vrot.slane %v823, 1
      %v826 = vor.u32 %v821, %v825
      %v828 = vshll.u32 %v769, 16
      %v830 = vrot.slane %v828, 1
      %v831 = vsel %vm783, %v826, %v830
      %v833 = vshrl.u32 %v753, 16
      %v835 = vshll.u32 %v753, 16
      %v837 = vrot.slane %v835, 1
      %v838 = vor.u32 %v833, %v837
      %v840 = vshll.u32 %v770, 16
      %v842 = vrot.slane %v840, 1
      %v843 = vsel %vm783, %v838, %v842
      %v845 = vshrl.u32 %v754, 16
      %v847 = vshll.u32 %v754, 16
      %v849 = vrot.slane %v847, 1
      %v850 = vor.u32 %v845, %v849
      %v852 = vshll.u32 %v771, 16
      %v854 = vrot.slane %v852, 1
      %v855 = vsel %vm783, %v850, %v854
      %v857 = vshrl.u32 %v755, 16
      %v859 = vshll.u32 %v755, 16
      %v861 = vrot.slane %v859, 1
      %v862 = vor.u32 %v857, %v861
      %v864 = vshll.u32 %v772, 16
      %v866 = vrot.slane %v864, 1
      %v867 = vsel %vm783, %v862, %v866
      %v869 = vshrl.u32 %v756, 16
      %v871 = vshll.u32 %v756, 16
      %v873 = vrot.slane %v871, 1
      %v874 = vor.u32 %v869, %v873
      %v876 = vshll.u32 %v773, 16
      %v878 = vrot.slane %v876, 1
      %v879 = vsel %vm783, %v874, %v878
      %v881 = vshrl.u32 %v757, 16
      %v883 = vshll.u32 %v757, 16
      %v885 = vrot.slane %v883, 1
      %v886 = vor.u32 %v881, %v885
      %v888 = vshll.u32 %v774, 16
      %v890 = vrot.slane %v888, 1
      %v891 = vsel %vm783, %v886, %v890
      %v893 = vshrl.u32 %v758, 16
      %v895 = vshll.u32 %v758, 16
      %v897 = vrot.slane %v895, 1
      %v898 = vor.u32 %v893, %v897
      %v900 = vshll.u32 %v775, 16
      %v902 = vrot.slane %v900, 1
      %v903 = vsel %vm783, %v898, %v902
      %v905 = vshrl.u32 %v759, 16
      %v907 = vshll.u32 %v759, 16
      %v909 = vrot.slane %v907, 1
      %v910 = vor.u32 %v905, %v909
      %v912 = vshll.u32 %v776, 16
      %v914 = vrot.slane %v912, 1
      %v915 = vsel %vm783, %v910, %v914
      %v917 = vshrl.u32 %v760, 16
      %v919 = vshll.u32 %v760, 16
      %v921 = vrot.slane %v919, 1
      %v922 = vor.u32 %v917, %v921
      %v924 = vshll.u32 %v777, 16
      %v926 = vrot.slane %v924, 1
      %v927 = vsel %vm783, %v922, %v926
      %v929 = vshrl.u32 %v761, 16
      %v931 = vshll.u32 %v761, 16
      %v933 = vrot.slane %v931, 1
      %v934 = vor.u32 %v929, %v933
      %v936 = vshll.u32 %v778, 16
      %v938 = vrot.slane %v936, 1
      %v939 = vsel %vm783, %v934, %v938
      %v941 = vshrl.u32 %v762, 16
      %v943 = vshll.u32 %v762, 16
      %v945 = vrot.slane %v943, 1
      %v946 = vor.u32 %v941, %v945
      %v948 = vshll.u32 %v779, 16
      %v950 = vrot.slane %v948, 1
      %v951 = vsel %vm783, %v946, %v950
      %v953 = vshrl.u32 %v763, 16
      %v955 = vshll.u32 %v763, 16
      %v957 = vrot.slane %v955, 1
      %v958 = vor.u32 %v953, %v957
      %v960 = vshll.u32 %v780, 16
      %v962 = vrot.slane %v960, 1
      %v963 = vsel %vm783, %v958, %v962
      %v965 = vshrl.u32 %v764, 16
      %v967 = vshll.u32 %v764, 16
      %v969 = vrot.slane %v967, 1
      %v970 = vor.u32 %v965, %v969
      %v972 = vshll.u32 %v781, 16
      %v974 = vrot.slane %v972, 1
      %v975 = vsel %vm783, %v970, %v974
      %vm1008 = vcmask 1046528
      %v1009 = vrot.slane %v749, 1
      %v1010 = vrot.slane %v766, 1
      %v1011 = vsel %vm1008, %v1009, %v1010
      %v1012 = vrot.slane %v750, 1
      %v1013 = vrot.slane %v767, 1
      %v1014 = vsel %vm1008, %v1012, %v1013
      %v1015 = vrot.slane %v751, 1
      %v1016 = vrot.slane %v768, 1
      %v1017 = vsel %vm1008, %v1015, %v1016
      %v1018 = vrot.slane %v752, 1
      %v1019 = vrot.slane %v769, 1
      %v1020 = vsel %vm1008, %v1018, %v1019
      %v1021 = vrot.slane %v753, 1
      %v1022 = vrot.slane %v770, 1
      %v1023 = vsel %vm1008, %v1021, %v1022
      %v1024 = vrot.slane %v754, 1
      %v1025 = vrot.slane %v771, 1
      %v1026 = vsel %vm1008, %v1024, %v1025
      %v1027 = vrot.slane %v755, 1
      %v1028 = vrot.slane %v772, 1
      %v1029 = vsel %vm1008, %v1027, %v1028
      %v1030 = vrot.slane %v756, 1
      %v1031 = vrot.slane %v773, 1
      %v1032 = vsel %vm1008, %v1030, %v1031
      %v1033 = vrot.slane %v757, 1
      %v1034 = vrot.slane %v774, 1
      %v1035 = vsel %vm1008, %v1033, %v1034
      %v1036 = vrot.slane %v758, 1
      %v1037 = vrot.slane %v775, 1
      %v1038 = vsel %vm1008, %v1036, %v1037
      %v1039 = vrot.slane %v759, 1
      %v1040 = vrot.slane %v776, 1
      %v1041 = vsel %vm1008, %v1039, %v1040
      %v1042 = vrot.slane %v760, 1
      %v1043 = vrot.slane %v777, 1
      %v1044 = vsel %vm1008, %v1042, %v1043
      %v1045 = vrot.slane %v761, 1
      %v1046 = vrot.slane %v778, 1
      %v1047 = vsel %vm1008, %v1045, %v1046
      %v1048 = vrot.slane %v762, 1
      %v1049 = vrot.slane %v779, 1
      %v1050 = vsel %vm1008, %v1048, %v1049
      %v1051 = vrot.slane %v763, 1
      %v1052 = vrot.slane %v780, 1
      %v1053 = vsel %vm1008, %v1051, %v1052
      %v1054 = vrot.slane %v764, 1
      %v1055 = vrot.slane %v781, 1
      %v1056 = vsel %vm1008, %v1054, %v1055
      %v1058 = vshrl.u32 %v765, 16
      %v1060 = vshll.u32 %v765, 16
      %v1062 = vrot.slane %v1060, 1
      %v1063 = vor.u32 %v1058, %v1062
      %v1065 = vshll.u32 %v782, 16
      %v1067 = vrot.slane %v1065, 1
      %v1068 = vsel %vm783, %v1063, %v1067
      %v1071 = vrot.slane %v765, 1
      %v1072 = vrot.slane %v782, 1
      %v1073 = vsel %vm1008, %v1071, %v1072
      %1074 = vrot.lane.b32.xlu0 %v795, 4
      %v1075 = vpop.permute.xlu0 %1074
      %1076 = vrot.lane.b32.xlu0 %v807, 4
      %v1077 = vpop.permute.xlu0 %1076
      %1078 = vrot.lane.b32.xlu0 %v819, 4
      %v1079 = vpop.permute.xlu0 %1078
      %1080 = vrot.lane.b32.xlu0 %v831, 4
      %v1081 = vpop.permute.xlu0 %1080
      %1082 = vrot.lane.b32.xlu0 %v843, 4
      %v1083 = vpop.permute.xlu0 %1082
      %1084 = vrot.lane.b32.xlu0 %v855, 4
      %v1085 = vpop.permute.xlu0 %1084
      %1086 = vrot.lane.b32.xlu0 %v867, 4
      %v1087 = vpop.permute.xlu0 %1086
      %1088 = vrot.lane.b32.xlu0 %v879, 4
      %v1089 = vpop.permute.xlu0 %1088
      %1090 = vrot.lane.b32.xlu0 %v891, 4
      %v1091 = vpop.permute.xlu0 %1090
      %1092 = vrot.lane.b32.xlu0 %v903, 4
      %v1093 = vpop.permute.xlu0 %1092
      %1094 = vrot.lane.b32.xlu0 %v915, 4
      %v1095 = vpop.permute.xlu0 %1094
      %1096 = vrot.lane.b32.xlu0 %v927, 4
      %v1097 = vpop.permute.xlu0 %1096
      %1098 = vrot.lane.b32.xlu0 %v939, 4
      %v1099 = vpop.permute.xlu0 %1098
      %1100 = vrot.lane.b32.xlu0 %v951, 4
      %v1101 = vpop.permute.xlu0 %1100
      %1102 = vrot.lane.b32.xlu0 %v963, 4
      %v1103 = vpop.permute.xlu0 %1102
      %1104 = vrot.lane.b32.xlu0 %v975, 4
      %v1105 = vpop.permute.xlu0 %1104
      %1106 = vrot.lane.b32.xlu0 %v1011, 8
      %v1107 = vpop.permute.xlu0 %1106
      %1108 = vrot.lane.b32.xlu0 %v1014, 8
      %v1109 = vpop.permute.xlu0 %1108
      %1110 = vrot.lane.b32.xlu0 %v1017, 8
      %v1111 = vpop.permute.xlu0 %1110
      %1112 = vrot.lane.b32.xlu0 %v1020, 8
      %v1113 = vpop.permute.xlu0 %1112
      %1114 = vrot.lane.b32.xlu0 %v1023, 8
      %v1115 = vpop.permute.xlu0 %1114
      %1116 = vrot.lane.b32.xlu0 %v1026, 8
      %v1117 = vpop.permute.xlu0 %1116
      %1118 = vrot.lane.b32.xlu0 %v1029, 8
      %v1119 = vpop.permute.xlu0 %1118
      %1120 = vrot.lane.b32.xlu0 %v1032, 8
      %v1121 = vpop.permute.xlu0 %1120
      %1122 = vrot.lane.b32.xlu0 %v1035, 8
      %v1123 = vpop.permute.xlu0 %1122
      %1124 = vrot.lane.b32.xlu0 %v1038, 8
      %v1125 = vpop.permute.xlu0 %1124
      %1126 = vrot.lane.b32.xlu0 %v1041, 8
      %v1127 = vpop.permute.xlu0 %1126
      %1128 = vrot.lane.b32.xlu0 %v1044, 8
      %v1129 = vpop.permute.xlu0 %1128
      %1130 = vrot.lane.b32.xlu0 %v1047, 8
      %v1131 = vpop.permute.xlu0 %1130
      %1132 = vrot.lane.b32.xlu0 %v1050, 8
      %v1133 = vpop.permute.xlu0 %1132
      %1134 = vrot.lane.b32.xlu0 %v1053, 8
      %v1135 = vpop.permute.xlu0 %1134
      %1136 = vrot.lane.b32.xlu0 %v1056, 8
      %v1137 = vpop.permute.xlu0 %1136
      %1138 = vrot.lane.b32.xlu0 %v750, 12
      %v1139 = vpop.permute.xlu0 %1138
      %1140 = vrot.lane.b32.xlu0 %v751, 12
      %v1141 = vpop.permute.xlu0 %1140
      %1142 = vrot.lane.b32.xlu0 %v752, 12
      %v1143 = vpop.permute.xlu0 %1142
      %1144 = vrot.lane.b32.xlu0 %v753, 12
      %v1145 = vpop.permute.xlu0 %1144
      %1146 = vrot.lane.b32.xlu0 %v754, 12
      %v1147 = vpop.permute.xlu0 %1146
      %1148 = vrot.lane.b32.xlu0 %v755, 12
      %v1149 = vpop.permute.xlu0 %1148
      %1150 = vrot.lane.b32.xlu0 %v756, 12
      %v1151 = vpop.permute.xlu0 %1150
      %1152 = vrot.lane.b32.xlu0 %v757, 12
      %v1153 = vpop.permute.xlu0 %1152
      %1154 = vrot.lane.b32.xlu0 %v758, 12
      %v1155 = vpop.permute.xlu0 %1154
      %1156 = vrot.lane.b32.xlu0 %v759, 12
      %v1157 = vpop.permute.xlu0 %1156
      %1158 = vrot.lane.b32.xlu0 %v760, 12
      %v1159 = vpop.permute.xlu0 %1158
      %1160 = vrot.lane.b32.xlu0 %v761, 12
      %v1161 = vpop.permute.xlu0 %1160
      %1162 = vrot.lane.b32.xlu0 %v762, 12
      %v1163 = vpop.permute.xlu0 %1162
      %1164 = vrot.lane.b32.xlu0 %v763, 12
      %v1165 = vpop.permute.xlu0 %1164
      %1166 = vrot.lane.b32.xlu0 %v764, 12
      %v1167 = vpop.permute.xlu0 %1166
      %1168 = vrot.lane.b32.xlu0 %v765, 12
      %v1169 = vpop.permute.xlu0 %1168
      %1170 = vrot.lane.b32.xlu0 %v807, 16
      %v1171 = vpop.permute.xlu0 %1170
      %1172 = vrot.lane.b32.xlu0 %v819, 16
      %v1173 = vpop.permute.xlu0 %1172
      %1174 = vrot.lane.b32.xlu0 %v831, 16
      %v1175 = vpop.permute.xlu0 %1174
      %1176 = vrot.lane.b32.xlu0 %v843, 16
      %v1177 = vpop.permute.xlu0 %1176
      %1178 = vrot.lane.b32.xlu0 %v855, 16
      %v1179 = vpop.permute.xlu0 %1178
      %1180 = vrot.lane.b32.xlu0 %v867, 16
      %v1181 = vpop.permute.xlu0 %1180
      %1182 = vrot.lane.b32.xlu0 %v879, 16
      %v1183 = vpop.permute.xlu0 %1182
      %1184 = vrot.lane.b32.xlu0 %v891, 16
      %v1185 = vpop.permute.xlu0 %1184
      %1186 = vrot.lane.b32.xlu0 %v903, 16
      %v1187 = vpop.permute.xlu0 %1186
      %1188 = vrot.lane.b32.xlu0 %v915, 16
      %v1189 = vpop.permute.xlu0 %1188
      %1190 = vrot.lane.b32.xlu0 %v927, 16
      %v1191 = vpop.permute.xlu0 %1190
      %1192 = vrot.lane.b32.xlu0 %v939, 16
      %v1193 = vpop.permute.xlu0 %1192
      %1194 = vrot.lane.b32.xlu0 %v951, 16
      %v1195 = vpop.permute.xlu0 %1194
      %1196 = vrot.lane.b32.xlu0 %v963, 16
      %v1197 = vpop.permute.xlu0 %1196
      %1198 = vrot.lane.b32.xlu0 %v975, 16
      %v1199 = vpop.permute.xlu0 %1198
      %1200 = vrot.lane.b32.xlu0 %v1068, 16
      %v1201 = vpop.permute.xlu0 %1200
      %1202 = vrot.lane.b32.xlu0 %v1014, 20
      %v1203 = vpop.permute.xlu0 %1202
      %1204 = vrot.lane.b32.xlu0 %v1017, 20
      %v1205 = vpop.permute.xlu0 %1204
      %1206 = vrot.lane.b32.xlu0 %v1020, 20
      %v1207 = vpop.permute.xlu0 %1206
      %1208 = vrot.lane.b32.xlu0 %v1023, 20
      %v1209 = vpop.permute.xlu0 %1208
      %1210 = vrot.lane.b32.xlu0 %v1026, 20
      %v1211 = vpop.permute.xlu0 %1210
      %1212 = vrot.lane.b32.xlu0 %v1029, 20
      %v1213 = vpop.permute.xlu0 %1212
      %1214 = vrot.lane.b32.xlu0 %v1032, 20
      %v1215 = vpop.permute.xlu0 %1214
      %1216 = vrot.lane.b32.xlu0 %v1035, 20
      %v1217 = vpop.permute.xlu0 %1216
      %1218 = vrot.lane.b32.xlu0 %v1038, 20
      %v1219 = vpop.permute.xlu0 %1218
      %1220 = vrot.lane.b32.xlu0 %v1041, 20
      %v1221 = vpop.permute.xlu0 %1220
      %1222 = vrot.lane.b32.xlu0 %v1044, 20
      %v1223 = vpop.permute.xlu0 %1222
      %1224 = vrot.lane.b32.xlu0 %v1047, 20
      %v1225 = vpop.permute.xlu0 %1224
      %1226 = vrot.lane.b32.xlu0 %v1050, 20
      %v1227 = vpop.permute.xlu0 %1226
      %1228 = vrot.lane.b32.xlu0 %v1053, 20
      %v1229 = vpop.permute.xlu0 %1228
      %1230 = vrot.lane.b32.xlu0 %v1056, 20
      %v1231 = vpop.permute.xlu0 %1230
      %1232 = vrot.lane.b32.xlu0 %v1073, 20
      %v1233 = vpop.permute.xlu0 %1232
      %1234 = vrot.lane.b32.xlu0 %v751, 24
      %v1235 = vpop.permute.xlu0 %1234
      %1236 = vrot.lane.b32.xlu0 %v752, 24
      %v1237 = vpop.permute.xlu0 %1236
      %1238 = vrot.lane.b32.xlu0 %v753, 24
      %v1239 = vpop.permute.xlu0 %1238
      %1240 = vrot.lane.b32.xlu0 %v754, 24
      %v1241 = vpop.permute.xlu0 %1240
      %1242 = vrot.lane.b32.xlu0 %v755, 24
      %v1243 = vpop.permute.xlu0 %1242
      %1244 = vrot.lane.b32.xlu0 %v756, 24
      %v1245 = vpop.permute.xlu0 %1244
      %1246 = vrot.lane.b32.xlu0 %v757, 24
      %v1247 = vpop.permute.xlu0 %1246
      %1248 = vrot.lane.b32.xlu0 %v758, 24
      %v1249 = vpop.permute.xlu0 %1248
      %1250 = vrot.lane.b32.xlu0 %v759, 24
      %v1251 = vpop.permute.xlu0 %1250
      %1252 = vrot.lane.b32.xlu0 %v760, 24
      %v1253 = vpop.permute.xlu0 %1252
      %1254 = vrot.lane.b32.xlu0 %v761, 24
      %v1255 = vpop.permute.xlu0 %1254
      %1256 = vrot.lane.b32.xlu0 %v762, 24
      %v1257 = vpop.permute.xlu0 %1256
      %1258 = vrot.lane.b32.xlu0 %v763, 24
      %v1259 = vpop.permute.xlu0 %1258
      %1260 = vrot.lane.b32.xlu0 %v764, 24
      %v1261 = vpop.permute.xlu0 %1260
      %1262 = vrot.lane.b32.xlu0 %v765, 24
      %v1263 = vpop.permute.xlu0 %1262
      %1264 = vrot.lane.b32.xlu0 %v749, 24
      %v1265 = vpop.permute.xlu0 %1264
      %1266 = vrot.lane.b32.xlu0 %v819, 28
      %v1267 = vpop.permute.xlu0 %1266
      %1268 = vrot.lane.b32.xlu0 %v831, 28
      %v1269 = vpop.permute.xlu0 %1268
      %1270 = vrot.lane.b32.xlu0 %v843, 28
      %v1271 = vpop.permute.xlu0 %1270
      %1272 = vrot.lane.b32.xlu0 %v855, 28
      %v1273 = vpop.permute.xlu0 %1272
      %1274 = vrot.lane.b32.xlu0 %v867, 28
      %v1275 = vpop.permute.xlu0 %1274
      %1276 = vrot.lane.b32.xlu0 %v879, 28
      %v1277 = vpop.permute.xlu0 %1276
      %1278 = vrot.lane.b32.xlu0 %v891, 28
      %v1279 = vpop.permute.xlu0 %1278
      %1280 = vrot.lane.b32.xlu0 %v903, 28
      %v1281 = vpop.permute.xlu0 %1280
      %1282 = vrot.lane.b32.xlu0 %v915, 28
      %v1283 = vpop.permute.xlu0 %1282
      %1284 = vrot.lane.b32.xlu0 %v927, 28
      %v1285 = vpop.permute.xlu0 %1284
      %1286 = vrot.lane.b32.xlu0 %v939, 28
      %v1287 = vpop.permute.xlu0 %1286
      %1288 = vrot.lane.b32.xlu0 %v951, 28
      %v1289 = vpop.permute.xlu0 %1288
      %1290 = vrot.lane.b32.xlu0 %v963, 28
      %v1291 = vpop.permute.xlu0 %1290
      %1292 = vrot.lane.b32.xlu0 %v975, 28
      %v1293 = vpop.permute.xlu0 %1292
      %1294 = vrot.lane.b32.xlu0 %v1068, 28
      %v1295 = vpop.permute.xlu0 %1294
      %1296 = vrot.lane.b32.xlu0 %v795, 28
      %v1297 = vpop.permute.xlu0 %1296
      %1298 = vrot.lane.b32.xlu0 %v1017, 32
      %v1299 = vpop.permute.xlu0 %1298
      %1300 = vrot.lane.b32.xlu0 %v1020, 32
      %v1301 = vpop.permute.xlu0 %1300
      %1302 = vrot.lane.b32.xlu0 %v1023, 32
      %v1303 = vpop.permute.xlu0 %1302
      %1304 = vrot.lane.b32.xlu0 %v1026, 32
      %v1305 = vpop.permute.xlu0 %1304
      %1306 = vrot.lane.b32.xlu0 %v1029, 32
      %v1307 = vpop.permute.xlu0 %1306
      %1308 = vrot.lane.b32.xlu0 %v1032, 32
      %v1309 = vpop.permute.xlu0 %1308
      %1310 = vrot.lane.b32.xlu0 %v1035, 32
      %v1311 = vpop.permute.xlu0 %1310
      %1312 = vrot.lane.b32.xlu0 %v1038, 32
      %v1313 = vpop.permute.xlu0 %1312
      %1314 = vrot.lane.b32.xlu0 %v1041, 32
      %v1315 = vpop.permute.xlu0 %1314
      %1316 = vrot.lane.b32.xlu0 %v1044, 32
      %v1317 = vpop.permute.xlu0 %1316
      %1318 = vrot.lane.b32.xlu0 %v1047, 32
      %v1319 = vpop.permute.xlu0 %1318
      %1320 = vrot.lane.b32.xlu0 %v1050, 32
      %v1321 = vpop.permute.xlu0 %1320
      %1322 = vrot.lane.b32.xlu0 %v1053, 32
      %v1323 = vpop.permute.xlu0 %1322
      %1324 = vrot.lane.b32.xlu0 %v1056, 32
      %v1325 = vpop.permute.xlu0 %1324
      %1326 = vrot.lane.b32.xlu0 %v1073, 32
      %v1327 = vpop.permute.xlu0 %1326
      %1328 = vrot.lane.b32.xlu0 %v1011, 32
      %v1329 = vpop.permute.xlu0 %1328
      %vm1330 = vcmask 31744
      %v1332 = vsel %vm1330, %v749, %v1075
      %v1334 = vsel %vm1330, %v750, %v1077
      %v1336 = vsel %vm1330, %v751, %v1079
      %v1338 = vsel %vm1330, %v752, %v1081
      %v1340 = vsel %vm1330, %v753, %v1083
      %v1342 = vsel %vm1330, %v754, %v1085
      %v1344 = vsel %vm1330, %v755, %v1087
      %v1346 = vsel %vm1330, %v756, %v1089
      %v1348 = vsel %vm1330, %v757, %v1091
      %v1350 = vsel %vm1330, %v758, %v1093
      %v1352 = vsel %vm1330, %v759, %v1095
      %v1354 = vsel %vm1330, %v760, %v1097
      %v1356 = vsel %vm1330, %v761, %v1099
      %v1358 = vsel %vm1330, %v762, %v1101
      %v1360 = vsel %vm1330, %v763, %v1103
      %v1362 = vsel %vm1330, %v764, %v1105
      %vm1363 = vcmask 64512
      %v1365 = vsel %vm1363, %v1332, %v1107
      %v1367 = vsel %vm1363, %v1334, %v1109
      %v1369 = vsel %vm1363, %v1336, %v1111
      %v1371 = vsel %vm1363, %v1338, %v1113
      %v1373 = vsel %vm1363, %v1340, %v1115
      %v1375 = vsel %vm1363, %v1342, %v1117
      %v1377 = vsel %vm1363, %v1344, %v1119
      %v1379 = vsel %vm1363, %v1346, %v1121
      %v1381 = vsel %vm1363, %v1348, %v1123
      %v1383 = vsel %vm1363, %v1350, %v1125
      %v1385 = vsel %vm1363, %v1352, %v1127
      %v1387 = vsel %vm1363, %v1354, %v1129
      %v1389 = vsel %vm1363, %v1356, %v1131
      %v1391 = vsel %vm1363, %v1358, %v1133
      %v1393 = vsel %vm1363, %v1360, %v1135
      %v1395 = vsel %vm1363, %v1362, %v1137
      %vm1396 = vcmask 97280
      %v1398 = vsel %vm1396, %v1365, %v1139
      %v1400 = vsel %vm1396, %v1367, %v1141
      %v1402 = vsel %vm1396, %v1369, %v1143
      %v1404 = vsel %vm1396, %v1371, %v1145
      %v1406 = vsel %vm1396, %v1373, %v1147
      %v1408 = vsel %vm1396, %v1375, %v1149
      %v1410 = vsel %vm1396, %v1377, %v1151
      %v1412 = vsel %vm1396, %v1379, %v1153
      %v1414 = vsel %vm1396, %v1381, %v1155
      %v1416 = vsel %vm1396, %v1383, %v1157
      %v1418 = vsel %vm1396, %v1385, %v1159
      %v1420 = vsel %vm1396, %v1387, %v1161
      %v1422 = vsel %vm1396, %v1389, %v1163
      %v1424 = vsel %vm1396, %v1391, %v1165
      %v1426 = vsel %vm1396, %v1393, %v1167
      %v1428 = vsel %vm1396, %v1395, %v1169
      %v1430 = vsel %vm311, %v1398, %v1171
      %v1432 = vsel %vm311, %v1400, %v1173
      %v1434 = vsel %vm311, %v1402, %v1175
      %v1436 = vsel %vm311, %v1404, %v1177
      %v1438 = vsel %vm311, %v1406, %v1179
      %v1440 = vsel %vm311, %v1408, %v1181
      %v1442 = vsel %vm311, %v1410, %v1183
      %v1444 = vsel %vm311, %v1412, %v1185
      %v1446 = vsel %vm311, %v1414, %v1187
      %v1448 = vsel %vm311, %v1416, %v1189
      %v1450 = vsel %vm311, %v1418, %v1191
      %v1452 = vsel %vm311, %v1420, %v1193
      %v1454 = vsel %vm311, %v1422, %v1195
      %v1456 = vsel %vm311, %v1424, %v1197
      %v1458 = vsel %vm311, %v1426, %v1199
      %v1460 = vsel %vm311, %v1428, %v1201
      %vm1461 = vcmask 162816
      %v1463 = vsel %vm1461, %v1430, %v1203
      %v1465 = vsel %vm1461, %v1432, %v1205
      %v1467 = vsel %vm1461, %v1434, %v1207
      %v1469 = vsel %vm1461, %v1436, %v1209
      %v1471 = vsel %vm1461, %v1438, %v1211
      %v1473 = vsel %vm1461, %v1440, %v1213
      %v1475 = vsel %vm1461, %v1442, %v1215
      %v1477 = vsel %vm1461, %v1444, %v1217
      %v1479 = vsel %vm1461, %v1446, %v1219
      %v1481 = vsel %vm1461, %v1448, %v1221
      %v1483 = vsel %vm1461, %v1450, %v1223
      %v1485 = vsel %vm1461, %v1452, %v1225
      %v1487 = vsel %vm1461, %v1454, %v1227
      %v1489 = vsel %vm1461, %v1456, %v1229
      %v1491 = vsel %vm1461, %v1458, %v1231
      %v1493 = vsel %vm1461, %v1460, %v1233
      %vm1494 = vcmask 195584
      %v1496 = vsel %vm1494, %v1463, %v1235
      %v1498 = vsel %vm1494, %v1465, %v1237
      %v1500 = vsel %vm1494, %v1467, %v1239
      %v1502 = vsel %vm1494, %v1469, %v1241
      %v1504 = vsel %vm1494, %v1471, %v1243
      %v1506 = vsel %vm1494, %v1473, %v1245
      %v1508 = vsel %vm1494, %v1475, %v1247
      %v1510 = vsel %vm1494, %v1477, %v1249
      %v1512 = vsel %vm1494, %v1479, %v1251
      %v1514 = vsel %vm1494, %v1481, %v1253
      %v1516 = vsel %vm1494, %v1483, %v1255
      %v1518 = vsel %vm1494, %v1485, %v1257
      %v1520 = vsel %vm1494, %v1487, %v1259
      %v1522 = vsel %vm1494, %v1489, %v1261
      %v1524 = vsel %vm1494, %v1491, %v1263
      %v1526 = vsel %vm1494, %v1493, %v1265
      %vm1527 = vcmask 228352
      %v1529 = vsel %vm1527, %v1496, %v1267
      %v1531 = vsel %vm1527, %v1498, %v1269
      %v1533 = vsel %vm1527, %v1500, %v1271
      %v1535 = vsel %vm1527, %v1502, %v1273
      %v1537 = vsel %vm1527, %v1504, %v1275
      %v1539 = vsel %vm1527, %v1506, %v1277
      %v1541 = vsel %vm1527, %v1508, %v1279
      %v1543 = vsel %vm1527, %v1510, %v1281
      %v1545 = vsel %vm1527, %v1512, %v1283
      %v1547 = vsel %vm1527, %v1514, %v1285
      %v1549 = vsel %vm1527, %v1516, %v1287
      %v1551 = vsel %vm1527, %v1518, %v1289
      %v1553 = vsel %vm1527, %v1520, %v1291
      %v1555 = vsel %vm1527, %v1522, %v1293
      %v1557 = vsel %vm1527, %v1524, %v1295
      %v1559 = vsel %vm1527, %v1526, %v1297
      %vm1560 = vcmask 261120
      %v1562 = vsel %vm1560, %v1529, %v1299
      %v1564 = vsel %vm1560, %v1531, %v1301
      %v1566 = vsel %vm1560, %v1533, %v1303
      %v1568 = vsel %vm1560, %v1535, %v1305
      %v1570 = vsel %vm1560, %v1537, %v1307
      %v1572 = vsel %vm1560, %v1539, %v1309
      %v1574 = vsel %vm1560, %v1541, %v1311
      %v1576 = vsel %vm1560, %v1543, %v1313
      %v1578 = vsel %vm1560, %v1545, %v1315
      %v1580 = vsel %vm1560, %v1547, %v1317
      %v1582 = vsel %vm1560, %v1549, %v1319
      %v1584 = vsel %vm1560, %v1551, %v1321
      %v1586 = vsel %vm1560, %v1553, %v1323
      %v1588 = vsel %vm1560, %v1555, %v1325
      %v1590 = vsel %vm1560, %v1557, %v1327
      %v1592 = vsel %vm1560, %v1559, %v1329
      %v1593 = vld [vmem:[%s2] sm:$0xf]
      %v1594 = vld [vmem:[%s2 + $0x4] sm:$0xf]
      %v1595 = vld [vmem:[%s2 + $0x8] sm:$0xf]
      %v1596 = vld [vmem:[%s2 + $0xc] sm:$0xf]
      %v1597 = vld [vmem:[%s2 + $0x10] sm:$0x3]
      %v1598 = vld [vmem:[%s4 + $0x1] sm:$0x1]
      %v1599 = vperm.slane %v1598, 0
      %v1605 = vunpack.c.l.b16 %v1593
      %v1606 = vunpack.c.l.b16 %v1594
      %v1607 = vunpack.c.l.b16 %v1595
      %v1608 = vunpack.c.l.b16 %v1596
      %v1609 = vunpack.c.l.b16 %v1597
      %v1610 = vpack.c.b16 %v1606, %v1605
      %v1611 = vpack.c.b16 %v1608, %v1607
      %v1612 = vpack.c.b16 %v1609, %v1609
      %vm1615 = vcmask 293888
      %v1616 = vsel %vm1615, %v1562, 0
      %v1618 = vsel %vm1615, %v1564, 0
      %v1620 = vsel %vm1615, %v1566, 0
      %v1622 = vsel %vm1615, %v1568, 0
      %v1624 = vsel %vm1615, %v1570, 0
      %v1626 = vsel %vm1615, %v1572, 0
      %v1628 = vsel %vm1615, %v1574, 0
      %v1630 = vsel %vm1615, %v1576, 0
      %v1632 = vsel %vm1615, %v1578, 0
      %v1634 = vsel %vm1615, %v1580, 0
      %v1636 = vsel %vm1615, %v1582, 0
      %v1638 = vsel %vm1615, %v1584, 0
      %v1640 = vsel %vm1615, %v1586, 0
      %v1642 = vsel %vm1615, %v1588, 0
      %v1644 = vsel %vm1615, %v1590, 0
      %v1646 = vsel %vm1615, %v1592, 0
      %vm1648 = vcmask 1041408
      %v1650 = vsel %vm1648, %v1612, 0
      %1652 = vmatpush.bf16.msra.mxu0 0
      %1653 = vmatpush.bf16.msra.mxu0 0
      %1654 = vmatpush.bf16.msra.mxu0 0
      %1655 = vmatpush.bf16.msra.mxu0 0
      %1656 = vmatpush.bf16.msra.mxu0 0
      %1657 = vmatpush.bf16.msra.mxu0 %v1650
      %1658 = vmatpush.bf16.msra.mxu0 %v1611
      %1659 = vmatpush.bf16.msra.mxu0 %v1610
      %1660 = vmatmul.bf16.gmra.mxu0 %v1616
      %v1661 = vpop.f32.mrf.mxu0
      %v1662 = vadd.f32 %v1599, %v1661
      %v1663 = vpop.f32.mrf.mxu0
      %v1664 = vadd.f32 %v1599, %v1663
      %1665 = vmatmul.bf16.gmra.mxu0 %v1618
      %v1666 = vpop.f32.mrf.mxu0
      %v1667 = vadd.f32 %v1599, %v1666
      %v1668 = vpop.f32.mrf.mxu0
      %v1669 = vadd.f32 %v1599, %v1668
      %1670 = vmatmul.bf16.gmra.mxu0 %v1620
      %v1671 = vpop.f32.mrf.mxu0
      %v1672 = vadd.f32 %v1599, %v1671
      %v1673 = vpop.f32.mrf.mxu0
      %v1674 = vadd.f32 %v1599, %v1673
      %1675 = vmatmul.bf16.gmra.mxu0 %v1622
      %v1676 = vpop.f32.mrf.mxu0
      %v1677 = vadd.f32 %v1599, %v1676
      %v1678 = vpop.f32.mrf.mxu0
      %v1679 = vadd.f32 %v1599, %v1678
      %1680 = vmatmul.bf16.gmra.mxu0 %v1624
      %v1681 = vpop.f32.mrf.mxu0
      %v1682 = vadd.f32 %v1599, %v1681
      %v1683 = vpop.f32.mrf.mxu0
      %v1684 = vadd.f32 %v1599, %v1683
      %1685 = vmatmul.bf16.gmra.mxu0 %v1626
      %v1686 = vpop.f32.mrf.mxu0
      %v1687 = vadd.f32 %v1599, %v1686
      %v1688 = vpop.f32.mrf.mxu0
      %v1689 = vadd.f32 %v1599, %v1688
      %1690 = vmatmul.bf16.gmra.mxu0 %v1628
      %v1691 = vpop.f32.mrf.mxu0
      %v1692 = vadd.f32 %v1599, %v1691
      %v1693 = vpop.f32.mrf.mxu0
      %v1694 = vadd.f32 %v1599, %v1693
      %1695 = vmatmul.bf16.gmra.mxu0 %v1630
      %v1696 = vpop.f32.mrf.mxu0
      %v1697 = vadd.f32 %v1599, %v1696
      %v1698 = vpop.f32.mrf.mxu0
      %v1699 = vadd.f32 %v1599, %v1698
      %1700 = vmatmul.bf16.gmra.mxu0 %v1632
      %v1701 = vpop.f32.mrf.mxu0
      %v1702 = vadd.f32 %v1599, %v1701
      %v1703 = vpop.f32.mrf.mxu0
      %v1704 = vadd.f32 %v1599, %v1703
      %1705 = vmatmul.bf16.gmra.mxu0 %v1634
      %v1706 = vpop.f32.mrf.mxu0
      %v1707 = vadd.f32 %v1599, %v1706
      %v1708 = vpop.f32.mrf.mxu0
      %v1709 = vadd.f32 %v1599, %v1708
      %1710 = vmatmul.bf16.gmra.mxu0 %v1636
      %v1711 = vpop.f32.mrf.mxu0
      %v1712 = vadd.f32 %v1599, %v1711
      %v1713 = vpop.f32.mrf.mxu0
      %v1714 = vadd.f32 %v1599, %v1713
      %1715 = vmatmul.bf16.gmra.mxu0 %v1638
      %v1716 = vpop.f32.mrf.mxu0
      %v1717 = vadd.f32 %v1599, %v1716
      %v1718 = vpop.f32.mrf.mxu0
      %v1719 = vadd.f32 %v1599, %v1718
      %1720 = vmatmul.bf16.gmra.mxu0 %v1640
      %v1721 = vpop.f32.mrf.mxu0
      %v1722 = vadd.f32 %v1599, %v1721
      %v1723 = vpop.f32.mrf.mxu0
      %v1724 = vadd.f32 %v1599, %v1723
      %1725 = vmatmul.bf16.gmra.mxu0 %v1642
      %v1726 = vpop.f32.mrf.mxu0
      %v1727 = vadd.f32 %v1599, %v1726
      %v1728 = vpop.f32.mrf.mxu0
      %v1729 = vadd.f32 %v1599, %v1728
      %1730 = vmatmul.bf16.gmra.mxu0 %v1644
      %v1731 = vpop.f32.mrf.mxu0
      %v1732 = vadd.f32 %v1599, %v1731
      %v1733 = vpop.f32.mrf.mxu0
      %v1734 = vadd.f32 %v1599, %v1733
      %1735 = vmatmul.bf16.gmra.mxu0 %v1646
      %v1736 = vpop.f32.mrf.mxu0
      %v1737 = vadd.f32 %v1599, %v1736
      %v1738 = vpop.f32.mrf.mxu0
      %v1739 = vadd.f32 %v1599, %v1738
      %1740 = vdwg.mxu0
      %v1741 = vmax.f32 %v1662, 0.0
      %v1742 = vmax.f32 %v1664, 0.0
      %v1743 = vmax.f32 %v1667, 0.0
      %v1744 = vmax.f32 %v1669, 0.0
      %v1745 = vmax.f32 %v1672, 0.0
      %v1746 = vmax.f32 %v1674, 0.0
      %v1747 = vmax.f32 %v1677, 0.0
      %v1748 = vmax.f32 %v1679, 0.0
      %v1749 = vmax.f32 %v1682, 0.0
      %v1750 = vmax.f32 %v1684, 0.0
      %v1751 = vmax.f32 %v1687, 0.0
      %v1752 = vmax.f32 %v1689, 0.0
      %v1753 = vmax.f32 %v1692, 0.0
      %v1754 = vmax.f32 %v1694, 0.0
      %v1755 = vmax.f32 %v1697, 0.0
      %v1756 = vmax.f32 %v1699, 0.0
      %v1757 = vmax.f32 %v1702, 0.0
      %v1758 = vmax.f32 %v1704, 0.0
      %v1759 = vmax.f32 %v1707, 0.0
      %v1760 = vmax.f32 %v1709, 0.0
      %v1761 = vmax.f32 %v1712, 0.0
      %v1762 = vmax.f32 %v1714, 0.0
      %v1763 = vmax.f32 %v1717, 0.0
      %v1764 = vmax.f32 %v1719, 0.0
      %v1765 = vmax.f32 %v1722, 0.0
      %v1766 = vmax.f32 %v1724, 0.0
      %v1767 = vmax.f32 %v1727, 0.0
      %v1768 = vmax.f32 %v1729, 0.0
      %v1769 = vmax.f32 %v1732, 0.0
      %v1770 = vmax.f32 %v1734, 0.0
      %v1771 = vmax.f32 %v1737, 0.0
      %v1772 = vmax.f32 %v1739, 0.0
      %v1773 = vpack.c.bf16 %v1742, %v1741
      %v1774 = vpack.c.bf16 %v1744, %v1743
      %v1775 = vpack.c.bf16 %v1746, %v1745
      %v1776 = vpack.c.bf16 %v1748, %v1747
      %v1777 = vpack.c.bf16 %v1750, %v1749
      %v1778 = vpack.c.bf16 %v1752, %v1751
      %v1779 = vpack.c.bf16 %v1754, %v1753
      %v1780 = vpack.c.bf16 %v1756, %v1755
      %v1781 = vpack.c.bf16 %v1758, %v1757
      %v1782 = vpack.c.bf16 %v1760, %v1759
      %v1783 = vpack.c.bf16 %v1762, %v1761
      %v1784 = vpack.c.bf16 %v1764, %v1763
      %v1785 = vpack.c.bf16 %v1766, %v1765
      %v1786 = vpack.c.bf16 %v1768, %v1767
      %v1787 = vpack.c.bf16 %v1770, %v1769
      %v1788 = vpack.c.bf16 %v1772, %v1771
      %v1789 = vld [vmem:[%s3] sm:$0x3]
      %v1790 = vld [vmem:[%s5] sm:$0x1]
      %v1792 = vperm.slane %v1790, 0
      %v1795 = vsel %vm1330, %v1773, 0
      %v1798 = vsel %vm1330, %v1774, 0
      %v1801 = vsel %vm1330, %v1775, 0
      %v1804 = vsel %vm1330, %v1776, 0
      %v1807 = vsel %vm1330, %v1777, 0
      %v1810 = vsel %vm1330, %v1778, 0
      %v1813 = vsel %vm1330, %v1779, 0
      %v1816 = vsel %vm1330, %v1780, 0
      %v1819 = vsel %vm1330, %v1781, 0
      %v1822 = vsel %vm1330, %v1782, 0
      %v1825 = vsel %vm1330, %v1783, 0
      %v1828 = vsel %vm1330, %v1784, 0
      %v1831 = vsel %vm1330, %v1785, 0
      %v1834 = vsel %vm1330, %v1786, 0
      %v1837 = vsel %vm1330, %v1787, 0
      %v1840 = vsel %vm1330, %v1788, 0
      %v1843 = vsel %vm1648, %v1789, 0
      %1845 = vmatpush.bf16.msra.mxu0 0
      %1846 = vmatpush.bf16.msra.mxu0 0
      %1847 = vmatpush.bf16.msra.mxu0 0
      %1848 = vmatpush.bf16.msra.mxu0 0
      %1849 = vmatpush.bf16.msra.mxu0 0
      %1850 = vmatpush.bf16.msra.mxu0 0
      %1851 = vmatpush.bf16.msra.mxu0 0
      %1852 = vmatpush.bf16.msra.mxu0 %v1843
      %1853 = vmatmul.bf16.gmra.mxu0 %v1795
      %v1854 = vpop.f32.mrf.mxu0
      %v1855 = vadd.f32 %v1792, %v1854
      %v1856 = vpop.f32.mrf.mxu0
      %v1857 = vadd.f32 %v1792, %v1856
      %1858 = vmatmul.bf16.gmra.mxu0 %v1798
      %v1859 = vpop.f32.mrf.mxu0
      %v1860 = vadd.f32 %v1792, %v1859
      %v1861 = vpop.f32.mrf.mxu0
      %v1862 = vadd.f32 %v1792, %v1861
      %1863 = vmatmul.bf16.gmra.mxu0 %v1801
      %v1864 = vpop.f32.mrf.mxu0
      %v1865 = vadd.f32 %v1792, %v1864
      %v1866 = vpop.f32.mrf.mxu0
      %v1867 = vadd.f32 %v1792, %v1866
      %1868 = vmatmul.bf16.gmra.mxu0 %v1804
      %v1869 = vpop.f32.mrf.mxu0
      %v1870 = vadd.f32 %v1792, %v1869
      %v1871 = vpop.f32.mrf.mxu0
      %v1872 = vadd.f32 %v1792, %v1871
      %1873 = vmatmul.bf16.gmra.mxu0 %v1807
      %v1874 = vpop.f32.mrf.mxu0
      %v1875 = vadd.f32 %v1792, %v1874
      %v1876 = vpop.f32.mrf.mxu0
      %v1877 = vadd.f32 %v1792, %v1876
      %1878 = vmatmul.bf16.gmra.mxu0 %v1810
      %v1879 = vpop.f32.mrf.mxu0
      %v1880 = vadd.f32 %v1792, %v1879
      %v1881 = vpop.f32.mrf.mxu0
      %v1882 = vadd.f32 %v1792, %v1881
      %1883 = vmatmul.bf16.gmra.mxu0 %v1813
      %v1884 = vpop.f32.mrf.mxu0
      %v1885 = vadd.f32 %v1792, %v1884
      %v1886 = vpop.f32.mrf.mxu0
      %v1887 = vadd.f32 %v1792, %v1886
      %1888 = vmatmul.bf16.gmra.mxu0 %v1816
      %v1889 = vpop.f32.mrf.mxu0
      %v1890 = vadd.f32 %v1792, %v1889
      %v1891 = vpop.f32.mrf.mxu0
      %v1892 = vadd.f32 %v1792, %v1891
      %1893 = vmatmul.bf16.gmra.mxu0 %v1819
      %v1894 = vpop.f32.mrf.mxu0
      %v1895 = vadd.f32 %v1792, %v1894
      %v1896 = vpop.f32.mrf.mxu0
      %v1897 = vadd.f32 %v1792, %v1896
      %1898 = vmatmul.bf16.gmra.mxu0 %v1822
      %v1899 = vpop.f32.mrf.mxu0
      %v1900 = vadd.f32 %v1792, %v1899
      %v1901 = vpop.f32.mrf.mxu0
      %v1902 = vadd.f32 %v1792, %v1901
      %1903 = vmatmul.bf16.gmra.mxu0 %v1825
      %v1904 = vpop.f32.mrf.mxu0
      %v1905 = vadd.f32 %v1792, %v1904
      %v1906 = vpop.f32.mrf.mxu0
      %v1907 = vadd.f32 %v1792, %v1906
      %1908 = vmatmul.bf16.gmra.mxu0 %v1828
      %v1909 = vpop.f32.mrf.mxu0
      %v1910 = vadd.f32 %v1792, %v1909
      %v1911 = vpop.f32.mrf.mxu0
      %v1912 = vadd.f32 %v1792, %v1911
      %1913 = vmatmul.bf16.gmra.mxu0 %v1831
      %v1914 = vpop.f32.mrf.mxu0
      %v1915 = vadd.f32 %v1792, %v1914
      %v1916 = vpop.f32.mrf.mxu0
      %v1917 = vadd.f32 %v1792, %v1916
      %1918 = vmatmul.bf16.gmra.mxu0 %v1834
      %v1919 = vpop.f32.mrf.mxu0
      %v1920 = vadd.f32 %v1792, %v1919
      %v1921 = vpop.f32.mrf.mxu0
      %v1922 = vadd.f32 %v1792, %v1921
      %1923 = vmatmul.bf16.gmra.mxu0 %v1837
      %v1924 = vpop.f32.mrf.mxu0
      %v1925 = vadd.f32 %v1792, %v1924
      %v1926 = vpop.f32.mrf.mxu0
      %v1927 = vadd.f32 %v1792, %v1926
      %1928 = vmatmul.bf16.gmra.mxu0 %v1840
      %v1929 = vpop.f32.mrf.mxu0
      %v1930 = vadd.f32 %v1792, %v1929
      %v1931 = vpop.f32.mrf.mxu0
      %v1932 = vadd.f32 %v1792, %v1931
      %1933 = vdwg.mxu0
      %v1934 = vadd.f32 %v1855, %v253
      %v1935 = vadd.f32 %v1857, %v254
      %v1936 = vadd.f32 %v1860, %v255
      %v1937 = vadd.f32 %v1862, %v256
      %v1938 = vadd.f32 %v1865, %v257
      %v1939 = vadd.f32 %v1867, %v258
      %v1940 = vadd.f32 %v1870, %v259
      %v1941 = vadd.f32 %v1872, %v260
      %v1942 = vadd.f32 %v1875, %v261
      %v1943 = vadd.f32 %v1877, %v262
      %v1944 = vadd.f32 %v1880, %v263
      %v1945 = vadd.f32 %v1882, %v264
      %v1946 = vadd.f32 %v1885, %v265
      %v1947 = vadd.f32 %v1887, %v266
      %v1948 = vadd.f32 %v1890, %v267
      %v1949 = vadd.f32 %v1892, %v268
      %v1950 = vadd.f32 %v1895, %v269
      %v1951 = vadd.f32 %v1897, %v270
      %v1952 = vadd.f32 %v1900, %v271
      %v1953 = vadd.f32 %v1902, %v272
      %v1954 = vadd.f32 %v1905, %v273
      %v1955 = vadd.f32 %v1907, %v274
      %v1956 = vadd.f32 %v1910, %v275
      %v1957 = vadd.f32 %v1912, %v276
      %v1958 = vadd.f32 %v1915, %v277
      %v1959 = vadd.f32 %v1917, %v278
      %v1960 = vadd.f32 %v1920, %v279
      %v1961 = vadd.f32 %v1922, %v280
      %v1962 = vadd.f32 %v1925, %v281
      %v1963 = vadd.f32 %v1927, %v282
      %v1964 = vadd.f32 %v1930, %v283
      %v1965 = vadd.f32 %v1932, %v284
      %v1966 = vmax.f32 %v1934, 0.0
      %v1967 = vmax.f32 %v1935, 0.0
      %v1968 = vmax.f32 %v1936, 0.0
      %v1969 = vmax.f32 %v1937, 0.0
      %v1970 = vmax.f32 %v1938, 0.0
      %v1971 = vmax.f32 %v1939, 0.0
      %v1972 = vmax.f32 %v1940, 0.0
      %v1973 = vmax.f32 %v1941, 0.0
      %v1974 = vmax.f32 %v1942, 0.0
      %v1975 = vmax.f32 %v1943, 0.0
      %v1976 = vmax.f32 %v1944, 0.0
      %v1977 = vmax.f32 %v1945, 0.0
      %v1978 = vmax.f32 %v1946, 0.0
      %v1979 = vmax.f32 %v1947, 0.0
      %v1980 = vmax.f32 %v1948, 0.0
      %v1981 = vmax.f32 %v1949, 0.0
      %v1982 = vmax.f32 %v1950, 0.0
      %v1983 = vmax.f32 %v1951, 0.0
      %v1984 = vmax.f32 %v1952, 0.0
      %v1985 = vmax.f32 %v1953, 0.0
      %v1986 = vmax.f32 %v1954, 0.0
      %v1987 = vmax.f32 %v1955, 0.0
      %v1988 = vmax.f32 %v1956, 0.0
      %v1989 = vmax.f32 %v1957, 0.0
      %v1990 = vmax.f32 %v1958, 0.0
      %v1991 = vmax.f32 %v1959, 0.0
      %v1992 = vmax.f32 %v1960, 0.0
      %v1993 = vmax.f32 %v1961, 0.0
      %v1994 = vmax.f32 %v1962, 0.0
      %v1995 = vmax.f32 %v1963, 0.0
      %v1996 = vmax.f32 %v1964, 0.0
      %v1997 = vmax.f32 %v1965, 0.0
      %1998 = vst.msk [vmem:[%s251] sm:$0xff] %vm311, %v1966
      %1999 = vst.msk [vmem:[%s251 + $0x8] sm:$0xff] %vm311, %v1967
      %2000 = vst.msk [vmem:[%s251 + $0x10] sm:$0xff] %vm311, %v1968
      %2001 = vst.msk [vmem:[%s251 + $0x18] sm:$0xff] %vm311, %v1969
      %2002 = vst.msk [vmem:[%s251 + $0x20] sm:$0xff] %vm311, %v1970
      %2003 = vst.msk [vmem:[%s251 + $0x28] sm:$0xff] %vm311, %v1971
      %2004 = vst.msk [vmem:[%s251 + $0x30] sm:$0xff] %vm311, %v1972
      %2005 = vst.msk [vmem:[%s251 + $0x38] sm:$0xff] %vm311, %v1973
      %2006 = vst.msk [vmem:[%s251 + $0x40] sm:$0xff] %vm311, %v1974
      %2007 = vst.msk [vmem:[%s251 + $0x48] sm:$0xff] %vm311, %v1975
      %2008 = vst.msk [vmem:[%s251 + $0x50] sm:$0xff] %vm311, %v1976
      %2009 = vst.msk [vmem:[%s251 + $0x58] sm:$0xff] %vm311, %v1977
      %2010 = vst.msk [vmem:[%s251 + $0x60] sm:$0xff] %vm311, %v1978
      %2011 = vst.msk [vmem:[%s251 + $0x68] sm:$0xff] %vm311, %v1979
      %2012 = vst.msk [vmem:[%s251 + $0x70] sm:$0xff] %vm311, %v1980
      %2013 = vst.msk [vmem:[%s251 + $0x78] sm:$0xff] %vm311, %v1981
      %2014 = vst.msk [vmem:[%s251 + $0x80] sm:$0xff] %vm311, %v1982
      %2015 = vst.msk [vmem:[%s251 + $0x88] sm:$0xff] %vm311, %v1983
      %2016 = vst.msk [vmem:[%s251 + $0x90] sm:$0xff] %vm311, %v1984
      %2017 = vst.msk [vmem:[%s251 + $0x98] sm:$0xff] %vm311, %v1985
      %2018 = vst.msk [vmem:[%s251 + $0xa0] sm:$0xff] %vm311, %v1986
      %2019 = vst.msk [vmem:[%s251 + $0xa8] sm:$0xff] %vm311, %v1987
      %2020 = vst.msk [vmem:[%s251 + $0xb0] sm:$0xff] %vm311, %v1988
      %2021 = vst.msk [vmem:[%s251 + $0xb8] sm:$0xff] %vm311, %v1989
      %2022 = vst.msk [vmem:[%s251 + $0xc0] sm:$0xff] %vm311, %v1990
      %2023 = vst.msk [vmem:[%s251 + $0xc8] sm:$0xff] %vm311, %v1991
      %2024 = vst.msk [vmem:[%s251 + $0xd0] sm:$0xff] %vm311, %v1992
      %2025 = vst.msk [vmem:[%s251 + $0xd8] sm:$0xff] %vm311, %v1993
      %2026 = vst.msk [vmem:[%s251 + $0xe0] sm:$0xff] %vm311, %v1994
      %2027 = vst.msk [vmem:[%s251 + $0xe8] sm:$0xff] %vm311, %v1995
      %2028 = vst.msk [vmem:[%s251 + $0xf0] sm:$0xff] %vm311, %v1996
      %2029 = vst.msk [vmem:[%s251 + $0xf8] sm:$0xff] %vm311, %v1997
      %p2030 = scmp.lt.s32.totalorder %s17, 1
      %s2031 = scalar_select %p2030, %s17, 1
      %s2032 = smul.addr %s2031, 32
      %s2033 = smul.addr %s2032, 8
      %s2034 = scalar_lea.vmem %s6, %s2033
      // Predicated region
      $region45: #{tpu_custom_call.1} parent=43 // pred_check
        %p2035 = pneg %p166
      $region46: #{tpu_custom_call.1} parent=43 // pred_check_branch
        %2037 = sbr.rel (%p2035) target = $region48
      $region47: #{tpu_custom_call.1} parent=43 // pred_region
        _
      $region48: #{tpu_custom_call.1} parent=43 // pred_fallthru
        _
    $region44: #{tpu_custom_call.1} parent=5 // pred_fallthru
      _
    %p2038 = scmp.le.s32.totalorder 2, %s12
    // Predicated region
    $region49: #{tpu_custom_call.1} parent=5 // pred_check
      %p2039 = pneg %p2038
    $region50: #{tpu_custom_call.1} parent=5 // pred_check_branch
      %2041 = sbr.rel (%p2039) target = $region52
    $region51: #{tpu_custom_call.1} parent=5 // pred_region
      %s2042 = ssub.s32 %s12, 2
      // Predicated region
      $region53: #{tpu_custom_call.1} parent=51 // pred_check
        %p2043 = pneg %p172
      $region54: #{tpu_custom_call.1} parent=51 // pred_check_branch
        %2045 = sbr.rel (%p2043) target = $region56
      $region55: #{tpu_custom_call.1} parent=51 // pred_region
        %p2046 = scmp.lt.s32.totalorder %s18, 1
        %s2047 = scalar_select %p2046, %s18, 1
        %s2048 = smul.addr %s2047, 32
        %s2049 = smul.addr %s2048, 8
        %s2050 = scalar_lea.vmem %s6, %s2049
      $region56: #{tpu_custom_call.1} parent=51 // pred_fallthru
        _
    $region52: #{tpu_custom_call.1} parent=5 // pred_fallthru
      _
  $region6: #{tpu_custom_call.1} parent=0 // loop_footer
    %s16 = sadd.s32 1, %s12
  $region7: #{tpu_custom_call.1} parent=0 // loop_footer_branch
    %11 = sbr.rel target = $region3
  $region8: #{tpu_custom_call.1} parent=0 // loop_exit
    _

</llo_original>
